<compile_context>
chip_gen: v6e
topology: v6e:2x2x1
jax: 0.10.0
libtpu: 0.0.40
codegen_flags: <defaults>
</compile_context>

<pallas_src>
import functools

import jax
import jax.numpy as jnp
from jax.experimental import pallas as pl
from jax.experimental.pallas import tpu as pltpu


def _sequence2_kernel(x_ref, wih0_ref, whh0_ref, b0_ref,
                      w1_ref, b1_ref, wlin_ref, blin_ref,
                      y_ref, h1_acc, *, B, T, Hp):
    """Whole 2-layer LSTM over T steps + output Linear in one invocation.

    x_ref:    (T*B, IN)   time-major flattened input
    wih0_ref: (IN, 4Hp)   layer-0 input->gates (gate-block padded)
    whh0_ref: (Hp, 4Hp)   layer-0 hidden->gates
    b0_ref:   (1, 4Hp)    layer-0 combined bias (bih0 + bhh0)
    w1_ref:   (2Hp, 4Hp)  layer-1 fused [Wih1; Whh1]
    b1_ref:   (1, 4Hp)    layer-1 combined bias
    wlin_ref: (Hp, OUT)   final Linear weight
    blin_ref: (1, OUT)    final Linear bias
    y_ref:    (T*B, OUT)  time-major output
    h1_acc:   (T*B, Hp)   VMEM scratch staging layer-1 hidden states
    """
    H4 = 4 * Hp

    # --- hoisted, non-recurrent work -------------------------------------------------
    # Layer-0 input projection for all timesteps at once (bias folded in).
    xg_all = (jnp.dot(x_ref[...], wih0_ref[...], preferred_element_type=jnp.float32)
              + b0_ref[...])                                     # (T*B, 4Hp)
    whh0 = whh0_ref[...]                                         # (Hp, 4Hp)
    w1 = w1_ref[...]                                             # (2Hp, 4Hp)
    b1 = jnp.broadcast_to(b1_ref[...], (B, H4))                  # hoisted broadcast

    def gates_to_hc(gates, c):
        # PyTorch gate order [i, f, g, o]; slice boundaries at multiples of 32.
        i_g = jax.nn.sigmoid(gates[:, 0 * Hp:1 * Hp])
        f_g = jax.nn.sigmoid(gates[:, 1 * Hp:2 * Hp])
        g_g = jnp.tanh(gates[:, 2 * Hp:3 * Hp])
        o_g = jax.nn.sigmoid(gates[:, 3 * Hp:4 * Hp])
        c_new = f_g * c + i_g * g_g
        h_new = o_g * jnp.tanh(c_new)
        return h_new, c_new

    zeros = jnp.zeros((B, Hp), jnp.float32)
    h0, c0, h1, c1 = zeros, zeros, zeros, zeros

    # --- serial recurrence: fully unrolled (T static & small) -------------------------
    for t in range(T):
        xg_t = xg_all[t * B:(t + 1) * B, :]                      # (B, 4Hp), static slice
        # layer 0: only the recurrent matmul remains on the serial chain
        g0 = xg_t + jnp.dot(h0, whh0, preferred_element_type=jnp.float32)
        h0, c0 = gates_to_hc(g0, c0)
        # layer 1: fused [h0_t, h1_prev] @ [Wih1; Whh1]  (dropout=0 between layers)
        z = jnp.concatenate([h0, h1], axis=-1)                   # (B, 2Hp)
        g1 = jnp.dot(z, w1, preferred_element_type=jnp.float32) + b1
        h1, c1 = gates_to_hc(g1, c1)
        h1_acc[t * B:(t + 1) * B, :] = h1                        # stage for output matmul

    # --- hoisted output projection: one matmul, one contiguous store ------------------
    y = (jnp.dot(h1_acc[...], wlin_ref[...], preferred_element_type=jnp.float32)
         + blin_ref[...])                                        # (T*B, OUT)
    y_ref[...] = y.astype(y_ref.dtype)


def _pad_gate_rows(w, H, Hp):
    """(4H, K) -> (4Hp, K): zero-pad each PyTorch gate block [i,f,g,o] from H to Hp rows."""
    K = w.shape[1]
    return jnp.pad(w.reshape(4, H, K), ((0, 0), (0, Hp - H), (0, 0))).reshape(4 * Hp, K)


def _pad_gate_bias(b, H, Hp):
    return jnp.pad(b.reshape(4, H), ((0, 0), (0, Hp - H))).reshape(4 * Hp)


def sequence2_forward(x, params):
    """x: (B, T, IN) float32. Returns (B, 1, T, OUT) matching Sequence2.forward(x, future=0)."""
    B, T, IN = x.shape
    H = params["whh0"].shape[1]          # hid_size (whh0 is (4H, H))
    OUT = params["wlin"].shape[0]        # out_size
    Hp = ((H + 31) // 32) * 32           # pad so 4*Hp is a multiple of 128 lanes

    pad_h = (0, Hp - H)

    # layer 0
    wih0 = _pad_gate_rows(params["wih0"], H, Hp).T                                 # (IN, 4Hp)
    whh0 = _pad_gate_rows(jnp.pad(params["whh0"], ((0, 0), pad_h)), H, Hp).T       # (Hp, 4Hp)
    b0 = (_pad_gate_bias(params["bih0"], H, Hp)
          + _pad_gate_bias(params["bhh0"], H, Hp)).reshape(1, 4 * Hp)
    # layer 1 (fused input/recurrent weights: operand is [h0_t, h1_prev] of width 2Hp)
    wih1 = _pad_gate_rows(jnp.pad(params["wih1"], ((0, 0), pad_h)), H, Hp).T       # (Hp, 4Hp)
    whh1 = _pad_gate_rows(jnp.pad(params["whh1"], ((0, 0), pad_h)), H, Hp).T       # (Hp, 4Hp)
    w1 = jnp.concatenate([wih1, whh1], axis=0)                                     # (2Hp, 4Hp)
    b1 = (_pad_gate_bias(params["bih1"], H, Hp)
          + _pad_gate_bias(params["bhh1"], H, Hp)).reshape(1, 4 * Hp)
    # final Linear
    wlin = jnp.pad(params["wlin"], ((0, 0), pad_h)).T                              # (Hp, OUT)
    blin = params["blin"].reshape(1, OUT)

    # time-major flattened input so each timestep's rows are contiguous in the kernel
    x_tm = jnp.transpose(x, (1, 0, 2)).reshape(T * B, IN)

    vmem_spec = pl.BlockSpec(memory_space=pltpu.MemorySpace.VMEM)
    y_tm = pl.pallas_call(
        functools.partial(_sequence2_kernel, B=B, T=T, Hp=Hp),
        out_shape=jax.ShapeDtypeStruct((T * B, OUT), jnp.float32),
        in_specs=[vmem_spec] * 8,
        out_specs=vmem_spec,
        scratch_shapes=[pltpu.VMEM((T * B, Hp), jnp.float32)],
    )(x_tm, wih0, whh0, b0, w1, b1, wlin, blin)

    y = jnp.transpose(y_tm.reshape(T, B, OUT), (1, 0, 2))        # (B, T, OUT)
    # torch.stack([out], 1) -> (B, 1, T, OUT); .squeeze(2) is a no-op for T > 1 (future=0)
    # TODO(synk): the future>0 closed-loop rollout branch of forward() is not implemented.
    return y.reshape(B, 1, T, OUT)


def _reference_forward(x, params):
    """Pure-JAX reference (same math as nn.LSTM(num_layers=2, batch_first=True) + Linear)."""
    B, T, IN = x.shape
    H = params["whh0"].shape[1]

    def cell(x_t, h, c, wih, whh, bih, bhh):
        gates = x_t @ wih.T + bih + h @ whh.T + bhh
        i, f, g, o = jnp.split(gates, 4, axis=-1)
        i, f, o = jax.nn.sigmoid(i), jax.nn.sigmoid(f), jax.nn.sigmoid(o)
        g = jnp.tanh(g)
        c_new = f * c + i * g
        return o * jnp.tanh(c_new), c_new

    h0 = c0 = h1 = c1 = jnp.zeros((B, H), jnp.float32)
    outs = []
    for t in range(T):
        h0, c0 = cell(x[:, t, :], h0, c0, params["wih0"], params["whh0"],
                      params["bih0"], params["bhh0"])
        h1, c1 = cell(h0, h1, c1, params["wih1"], params["whh1"],
                      params["bih1"], params["bhh1"])
        outs.append(h1 @ params["wlin"].T + params["blin"])
    y = jnp.stack(outs, axis=1)  # (B, T, OUT)
    return y.reshape(B, 1, T, -1)


def init_params(key, in_size, hid_size, out_size):
    """Deterministic init, PyTorch-style U(-1/sqrt(H), 1/sqrt(H))."""
    k = 1.0 / jnp.sqrt(jnp.float32(hid_size))
    keys = jax.random.split(key, 10)
    u = lambda kk, shape: jax.random.uniform(kk, shape, jnp.float32, -k, k)
    return {
        "wih0": u(keys[0], (4 * hid_size, in_size)),
        "whh0": u(keys[1], (4 * hid_size, hid_size)),
        "bih0": u(keys[2], (4 * hid_size,)),
        "bhh0": u(keys[3], (4 * hid_size,)),
        "wih1": u(keys[4], (4 * hid_size, hid_size)),
        "whh1": u(keys[5], (4 * hid_size, hid_size)),
        "bih1": u(keys[6], (4 * hid_size,)),
        "bhh1": u(keys[7], (4 * hid_size,)),
        "wlin": u(keys[8], (out_size, hid_size)),
        "blin": u(keys[9], (out_size,)),
    }


if __name__ == "__main__":
    in_size, hid_size, out_size = 1, 30, 1
    B, T = 2, 8

    key = jax.random.PRNGKey(0)
    kx, kp = jax.random.split(key)
    x = jax.random.normal(kx, (B, T, in_size), jnp.float32)
    params = init_params(kp, in_size, hid_size, out_size)

    y = sequence2_forward(x, params)
    y = jax.block_until_ready(y)
    assert y.shape == (B, 1, T, out_size), y.shape

    y_ref = _reference_forward(x, params)
    assert jnp.allclose(y, y_ref, atol=1e-4, rtol=1e-4), \
        float(jnp.max(jnp.abs(y - y_ref)))

    print("KERNEL_OK")
</pallas_src>

<mosaic_0001>
module attributes {stable_mosaic.version = 11 : i64} {
  func.func @_sequence2_kernel(%arg0: memref<16x1xf32, #tpu.memory_space<vmem>>, %arg1: memref<1x128xf32, #tpu.memory_space<vmem>>, %arg2: memref<32x128xf32, #tpu.memory_space<vmem>>, %arg3: memref<1x128xf32, #tpu.memory_space<vmem>>, %arg4: memref<64x128xf32, #tpu.memory_space<vmem>>, %arg5: memref<1x128xf32, #tpu.memory_space<vmem>>, %arg6: memref<32x1xf32, #tpu.memory_space<vmem>>, %arg7: memref<1x1xf32, #tpu.memory_space<vmem>>, %arg8: memref<16x1xf32, #tpu.memory_space<vmem>>, %arg9: memref<16x32xf32, #tpu.memory_space<vmem>>) attributes {dimension_semantics = [], scalar_prefetch = 0 : i64, scratch_operands = 1 : i64, tpu.core_type = #tpu.core_type<tc>} {
    %c0 = arith.constant 0 : index
    %c0_0 = arith.constant 0 : index
    %0 = vector.load %arg0[%c0, %c0_0] : memref<16x1xf32, #tpu.memory_space<vmem>>, vector<16x1xf32>
    %c0_1 = arith.constant 0 : index
    %c0_2 = arith.constant 0 : index
    %1 = vector.load %arg1[%c0_1, %c0_2] : memref<1x128xf32, #tpu.memory_space<vmem>>, vector<1x128xf32>
    %cst = arith.constant dense<0.000000e+00> : vector<16x128xf32>
    %2 = tpu.matmul %0, %1, %cst {dimension_numbers = #tpu.dot_dimension_numbers<[1], [0], [0], [1], [0, 0, 1, 1], [], []>} : vector<16x1xf32>, vector<1x128xf32>, vector<16x128xf32> -> vector<16x128xf32>
    %c0_3 = arith.constant 0 : index
    %c0_4 = arith.constant 0 : index
    %3 = vector.load %arg3[%c0_3, %c0_4] : memref<1x128xf32, #tpu.memory_space<vmem>>, vector<1x128xf32>
    %4 = vector.broadcast %3 : vector<1x128xf32> to vector<16x128xf32>
    %5 = arith.addf %2, %4 : vector<16x128xf32>
    %c0_5 = arith.constant 0 : index
    %c0_6 = arith.constant 0 : index
    %6 = vector.load %arg2[%c0_5, %c0_6] : memref<32x128xf32, #tpu.memory_space<vmem>>, vector<32x128xf32>
    %c0_7 = arith.constant 0 : index
    %c0_8 = arith.constant 0 : index
    %7 = vector.load %arg4[%c0_7, %c0_8] : memref<64x128xf32, #tpu.memory_space<vmem>>, vector<64x128xf32>
    %c0_9 = arith.constant 0 : index
    %c0_10 = arith.constant 0 : index
    %8 = vector.load %arg5[%c0_9, %c0_10] : memref<1x128xf32, #tpu.memory_space<vmem>>, vector<1x128xf32>
    %9 = vector.shape_cast %8 : vector<1x128xf32> to vector<1x128xf32>
    %10 = vector.broadcast %9 : vector<1x128xf32> to vector<2x128xf32>
    %cst_11 = arith.constant 0.000000e+00 : f32
    %11 = vector.broadcast %cst_11 : f32 to vector<2x32xf32>
    %12 = vector.extract_strided_slice %5 {offsets = [0, 0], sizes = [2, 128], strides = [1, 1]} : vector<16x128xf32> to vector<2x128xf32>
    %cst_12 = arith.constant dense<0.000000e+00> : vector<2x128xf32>
    %13 = tpu.matmul %11, %6, %cst_12 {dimension_numbers = #tpu.dot_dimension_numbers<[1], [0], [0], [1], [0, 0, 1, 1], [], []>} : vector<2x32xf32>, vector<32x128xf32>, vector<2x128xf32> -> vector<2x128xf32>
    %14 = arith.addf %12, %13 : vector<2x128xf32>
    %15 = vector.extract_strided_slice %14 {offsets = [0, 0], sizes = [2, 32], strides = [1, 1]} : vector<2x128xf32> to vector<2x32xf32>
    %16 = arith.negf %15 : vector<2x32xf32>
    %17 = math.exp %16 : vector<2x32xf32>
    %cst_13 = arith.constant 1.000000e+00 : f32
    %18 = vector.broadcast %cst_13 : f32 to vector<2x32xf32>
    %19 = arith.addf %18, %17 : vector<2x32xf32>
    %20 = arith.divf %18, %19 : vector<2x32xf32>
    %21 = vector.extract_strided_slice %14 {offsets = [0, 32], sizes = [2, 32], strides = [1, 1]} : vector<2x128xf32> to vector<2x32xf32>
    %22 = arith.negf %21 : vector<2x32xf32>
    %23 = math.exp %22 : vector<2x32xf32>
    %cst_14 = arith.constant 1.000000e+00 : f32
    %24 = vector.broadcast %cst_14 : f32 to vector<2x32xf32>
    %25 = arith.addf %24, %23 : vector<2x32xf32>
    %26 = arith.divf %24, %25 : vector<2x32xf32>
    %27 = vector.extract_strided_slice %14 {offsets = [0, 64], sizes = [2, 32], strides = [1, 1]} : vector<2x128xf32> to vector<2x32xf32>
    %28 = math.tanh %27 : vector<2x32xf32>
    %29 = vector.extract_strided_slice %14 {offsets = [0, 96], sizes = [2, 32], strides = [1, 1]} : vector<2x128xf32> to vector<2x32xf32>
    %30 = arith.negf %29 : vector<2x32xf32>
    %31 = math.exp %30 : vector<2x32xf32>
    %cst_15 = arith.constant 1.000000e+00 : f32
    %32 = vector.broadcast %cst_15 : f32 to vector<2x32xf32>
    %33 = arith.addf %32, %31 : vector<2x32xf32>
    %34 = arith.divf %32, %33 : vector<2x32xf32>
    %35 = arith.mulf %26, %11 : vector<2x32xf32>
    %36 = arith.mulf %20, %28 : vector<2x32xf32>
    %37 = arith.addf %35, %36 : vector<2x32xf32>
    %38 = math.tanh %37 : vector<2x32xf32>
    %39 = arith.mulf %34, %38 : vector<2x32xf32>
    %40 = tpu.concatenate %39, %11 in 1 : vector<2x32xf32>, vector<2x32xf32> -> vector<2x64xf32>
    %cst_16 = arith.constant dense<0.000000e+00> : vector<2x128xf32>
    %41 = tpu.matmul %40, %7, %cst_16 {dimension_numbers = #tpu.dot_dimension_numbers<[1], [0], [0], [1], [0, 0, 1, 1], [], []>} : vector<2x64xf32>, vector<64x128xf32>, vector<2x128xf32> -> vector<2x128xf32>
    %42 = arith.addf %41, %10 : vector<2x128xf32>
    %43 = vector.extract_strided_slice %42 {offsets = [0, 0], sizes = [2, 32], strides = [1, 1]} : vector<2x128xf32> to vector<2x32xf32>
    %44 = arith.negf %43 : vector<2x32xf32>
    %45 = math.exp %44 : vector<2x32xf32>
    %cst_17 = arith.constant 1.000000e+00 : f32
    %46 = vector.broadcast %cst_17 : f32 to vector<2x32xf32>
    %47 = arith.addf %46, %45 : vector<2x32xf32>
    %48 = arith.divf %46, %47 : vector<2x32xf32>
    %49 = vector.extract_strided_slice %42 {offsets = [0, 32], sizes = [2, 32], strides = [1, 1]} : vector<2x128xf32> to vector<2x32xf32>
    %50 = arith.negf %49 : vector<2x32xf32>
    %51 = math.exp %50 : vector<2x32xf32>
    %cst_18 = arith.constant 1.000000e+00 : f32
    %52 = vector.broadcast %cst_18 : f32 to vector<2x32xf32>
    %53 = arith.addf %52, %51 : vector<2x32xf32>
    %54 = arith.divf %52, %53 : vector<2x32xf32>
    %55 = vector.extract_strided_slice %42 {offsets = [0, 64], sizes = [2, 32], strides = [1, 1]} : vector<2x128xf32> to vector<2x32xf32>
    %56 = math.tanh %55 : vector<2x32xf32>
    %57 = vector.extract_strided_slice %42 {offsets = [0, 96], sizes = [2, 32], strides = [1, 1]} : vector<2x128xf32> to vector<2x32xf32>
    %58 = arith.negf %57 : vector<2x32xf32>
    %59 = math.exp %58 : vector<2x32xf32>
    %cst_19 = arith.constant 1.000000e+00 : f32
    %60 = vector.broadcast %cst_19 : f32 to vector<2x32xf32>
    %61 = arith.addf %60, %59 : vector<2x32xf32>
    %62 = arith.divf %60, %61 : vector<2x32xf32>
    %63 = arith.mulf %54, %11 : vector<2x32xf32>
    %64 = arith.mulf %48, %56 : vector<2x32xf32>
    %65 = arith.addf %63, %64 : vector<2x32xf32>
    %66 = math.tanh %65 : vector<2x32xf32>
    %67 = arith.mulf %62, %66 : vector<2x32xf32>
    %c0_20 = arith.constant 0 : index
    %c0_21 = arith.constant 0 : index
    %68 = vector.load %arg9[%c0_20, %c0_21] : memref<16x32xf32, #tpu.memory_space<vmem>>, vector<2x32xf32>
    tpu.vector_store %arg9[%c0_20, %c0_21], %67 {strides = array<i32>} : memref<16x32xf32, #tpu.memory_space<vmem>>, vector<2x32xf32>,
    %69 = vector.extract_strided_slice %5 {offsets = [2, 0], sizes = [2, 128], strides = [1, 1]} : vector<16x128xf32> to vector<2x128xf32>
    %cst_22 = arith.constant dense<0.000000e+00> : vector<2x128xf32>
    %70 = tpu.matmul %39, %6, %cst_22 {dimension_numbers = #tpu.dot_dimension_numbers<[1], [0], [0], [1], [0, 0, 1, 1], [], []>} : vector<2x32xf32>, vector<32x128xf32>, vector<2x128xf32> -> vector<2x128xf32>
    %71 = arith.addf %69, %70 : vector<2x128xf32>
    %72 = vector.extract_strided_slice %71 {offsets = [0, 0], sizes = [2, 32], strides = [1, 1]} : vector<2x128xf32> to vector<2x32xf32>
    %73 = arith.negf %72 : vector<2x32xf32>
    %74 = math.exp %73 : vector<2x32xf32>
    %cst_23 = arith.constant 1.000000e+00 : f32
    %75 = vector.broadcast %cst_23 : f32 to vector<2x32xf32>
    %76 = arith.addf %75, %74 : vector<2x32xf32>
    %77 = arith.divf %75, %76 : vector<2x32xf32>
    %78 = vector.extract_strided_slice %71 {offsets = [0, 32], sizes = [2, 32], strides = [1, 1]} : vector<2x128xf32> to vector<2x32xf32>
    %79 = arith.negf %78 : vector<2x32xf32>
    %80 = math.exp %79 : vector<2x32xf32>
    %cst_24 = arith.constant 1.000000e+00 : f32
    %81 = vector.broadcast %cst_24 : f32 to vector<2x32xf32>
    %82 = arith.addf %81, %80 : vector<2x32xf32>
    %83 = arith.divf %81, %82 : vector<2x32xf32>
    %84 = vector.extract_strided_slice %71 {offsets = [0, 64], sizes = [2, 32], strides = [1, 1]} : vector<2x128xf32> to vector<2x32xf32>
    %85 = math.tanh %84 : vector<2x32xf32>
    %86 = vector.extract_strided_slice %71 {offsets = [0, 96], sizes = [2, 32], strides = [1, 1]} : vector<2x128xf32> to vector<2x32xf32>
    %87 = arith.negf %86 : vector<2x32xf32>
    %88 = math.exp %87 : vector<2x32xf32>
    %cst_25 = arith.constant 1.000000e+00 : f32
    %89 = vector.broadcast %cst_25 : f32 to vector<2x32xf32>
    %90 = arith.addf %89, %88 : vector<2x32xf32>
    %91 = arith.divf %89, %90 : vector<2x32xf32>
    %92 = arith.mulf %83, %37 : vector<2x32xf32>
    %93 = arith.mulf %77, %85 : vector<2x32xf32>
    %94 = arith.addf %92, %93 : vector<2x32xf32>
    %95 = math.tanh %94 : vector<2x32xf32>
    %96 = arith.mulf %91, %95 : vector<2x32xf32>
    %97 = tpu.concatenate %96, %67 in 1 : vector<2x32xf32>, vector<2x32xf32> -> vector<2x64xf32>
    %cst_26 = arith.constant dense<0.000000e+00> : vector<2x128xf32>
    %98 = tpu.matmul %97, %7, %cst_26 {dimension_numbers = #tpu.dot_dimension_numbers<[1], [0], [0], [1], [0, 0, 1, 1], [], []>} : vector<2x64xf32>, vector<64x128xf32>, vector<2x128xf32> -> vector<2x128xf32>
    %99 = arith.addf %98, %10 : vector<2x128xf32>
    %100 = vector.extract_strided_slice %99 {offsets = [0, 0], sizes = [2, 32], strides = [1, 1]} : vector<2x128xf32> to vector<2x32xf32>
    %101 = arith.negf %100 : vector<2x32xf32>
    %102 = math.exp %101 : vector<2x32xf32>
    %cst_27 = arith.constant 1.000000e+00 : f32
    %103 = vector.broadcast %cst_27 : f32 to vector<2x32xf32>
    %104 = arith.addf %103, %102 : vector<2x32xf32>
    %105 = arith.divf %103, %104 : vector<2x32xf32>
    %106 = vector.extract_strided_slice %99 {offsets = [0, 32], sizes = [2, 32], strides = [1, 1]} : vector<2x128xf32> to vector<2x32xf32>
    %107 = arith.negf %106 : vector<2x32xf32>
    %108 = math.exp %107 : vector<2x32xf32>
    %cst_28 = arith.constant 1.000000e+00 : f32
    %109 = vector.broadcast %cst_28 : f32 to vector<2x32xf32>
    %110 = arith.addf %109, %108 : vector<2x32xf32>
    %111 = arith.divf %109, %110 : vector<2x32xf32>
    %112 = vector.extract_strided_slice %99 {offsets = [0, 64], sizes = [2, 32], strides = [1, 1]} : vector<2x128xf32> to vector<2x32xf32>
    %113 = math.tanh %112 : vector<2x32xf32>
    %114 = vector.extract_strided_slice %99 {offsets = [0, 96], sizes = [2, 32], strides = [1, 1]} : vector<2x128xf32> to vector<2x32xf32>
    %115 = arith.negf %114 : vector<2x32xf32>
    %116 = math.exp %115 : vector<2x32xf32>
    %cst_29 = arith.constant 1.000000e+00 : f32
    %117 = vector.broadcast %cst_29 : f32 to vector<2x32xf32>
    %118 = arith.addf %117, %116 : vector<2x32xf32>
    %119 = arith.divf %117, %118 : vector<2x32xf32>
    %120 = arith.mulf %111, %65 : vector<2x32xf32>
    %121 = arith.mulf %105, %113 : vector<2x32xf32>
    %122 = arith.addf %120, %121 : vector<2x32xf32>
    %123 = math.tanh %122 : vector<2x32xf32>
    %124 = arith.mulf %119, %123 : vector<2x32xf32>
    %c2 = arith.constant 2 : index
    %c0_30 = arith.constant 0 : index
    %125 = vector.load %arg9[%c2, %c0_30] : memref<16x32xf32, #tpu.memory_space<vmem>>, vector<2x32xf32>
    tpu.vector_store %arg9[%c2, %c0_30], %124 {strides = array<i32>} : memref<16x32xf32, #tpu.memory_space<vmem>>, vector<2x32xf32>,
    %126 = vector.extract_strided_slice %5 {offsets = [4, 0], sizes = [2, 128], strides = [1, 1]} : vector<16x128xf32> to vector<2x128xf32>
    %cst_31 = arith.constant dense<0.000000e+00> : vector<2x128xf32>
    %127 = tpu.matmul %96, %6, %cst_31 {dimension_numbers = #tpu.dot_dimension_numbers<[1], [0], [0], [1], [0, 0, 1, 1], [], []>} : vector<2x32xf32>, vector<32x128xf32>, vector<2x128xf32> -> vector<2x128xf32>
    %128 = arith.addf %126, %127 : vector<2x128xf32>
    %129 = vector.extract_strided_slice %128 {offsets = [0, 0], sizes = [2, 32], strides = [1, 1]} : vector<2x128xf32> to vector<2x32xf32>
    %130 = arith.negf %129 : vector<2x32xf32>
    %131 = math.exp %130 : vector<2x32xf32>
    %cst_32 = arith.constant 1.000000e+00 : f32
    %132 = vector.broadcast %cst_32 : f32 to vector<2x32xf32>
    %133 = arith.addf %132, %131 : vector<2x32xf32>
    %134 = arith.divf %132, %133 : vector<2x32xf32>
    %135 = vector.extract_strided_slice %128 {offsets = [0, 32], sizes = [2, 32], strides = [1, 1]} : vector<2x128xf32> to vector<2x32xf32>
    %136 = arith.negf %135 : vector<2x32xf32>
    %137 = math.exp %136 : vector<2x32xf32>
    %cst_33 = arith.constant 1.000000e+00 : f32
    %138 = vector.broadcast %cst_33 : f32 to vector<2x32xf32>
    %139 = arith.addf %138, %137 : vector<2x32xf32>
    %140 = arith.divf %138, %139 : vector<2x32xf32>
    %141 = vector.extract_strided_slice %128 {offsets = [0, 64], sizes = [2, 32], strides = [1, 1]} : vector<2x128xf32> to vector<2x32xf32>
    %142 = math.tanh %141 : vector<2x32xf32>
    %143 = vector.extract_strided_slice %128 {offsets = [0, 96], sizes = [2, 32], strides = [1, 1]} : vector<2x128xf32> to vector<2x32xf32>
    %144 = arith.negf %143 : vector<2x32xf32>
    %145 = math.exp %144 : vector<2x32xf32>
    %cst_34 = arith.constant 1.000000e+00 : f32
    %146 = vector.broadcast %cst_34 : f32 to vector<2x32xf32>
    %147 = arith.addf %146, %145 : vector<2x32xf32>
    %148 = arith.divf %146, %147 : vector<2x32xf32>
    %149 = arith.mulf %140, %94 : vector<2x32xf32>
    %150 = arith.mulf %134, %142 : vector<2x32xf32>
    %151 = arith.addf %149, %150 : vector<2x32xf32>
    %152 = math.tanh %151 : vector<2x32xf32>
    %153 = arith.mulf %148, %152 : vector<2x32xf32>
    %154 = tpu.concatenate %153, %124 in 1 : vector<2x32xf32>, vector<2x32xf32> -> vector<2x64xf32>
    %cst_35 = arith.constant dense<0.000000e+00> : vector<2x128xf32>
    %155 = tpu.matmul %154, %7, %cst_35 {dimension_numbers = #tpu.dot_dimension_numbers<[1], [0], [0], [1], [0, 0, 1, 1], [], []>} : vector<2x64xf32>, vector<64x128xf32>, vector<2x128xf32> -> vector<2x128xf32>
    %156 = arith.addf %155, %10 : vector<2x128xf32>
    %157 = vector.extract_strided_slice %156 {offsets = [0, 0], sizes = [2, 32], strides = [1, 1]} : vector<2x128xf32> to vector<2x32xf32>
    %158 = arith.negf %157 : vector<2x32xf32>
    %159 = math.exp %158 : vector<2x32xf32>
    %cst_36 = arith.constant 1.000000e+00 : f32
    %160 = vector.broadcast %cst_36 : f32 to vector<2x32xf32>
    %161 = arith.addf %160, %159 : vector<2x32xf32>
    %162 = arith.divf %160, %161 : vector<2x32xf32>
    %163 = vector.extract_strided_slice %156 {offsets = [0, 32], sizes = [2, 32], strides = [1, 1]} : vector<2x128xf32> to vector<2x32xf32>
    %164 = arith.negf %163 : vector<2x32xf32>
    %165 = math.exp %164 : vector<2x32xf32>
    %cst_37 = arith.constant 1.000000e+00 : f32
    %166 = vector.broadcast %cst_37 : f32 to vector<2x32xf32>
    %167 = arith.addf %166, %165 : vector<2x32xf32>
    %168 = arith.divf %166, %167 : vector<2x32xf32>
    %169 = vector.extract_strided_slice %156 {offsets = [0, 64], sizes = [2, 32], strides = [1, 1]} : vector<2x128xf32> to vector<2x32xf32>
    %170 = math.tanh %169 : vector<2x32xf32>
    %171 = vector.extract_strided_slice %156 {offsets = [0, 96], sizes = [2, 32], strides = [1, 1]} : vector<2x128xf32> to vector<2x32xf32>
    %172 = arith.negf %171 : vector<2x32xf32>
    %173 = math.exp %172 : vector<2x32xf32>
    %cst_38 = arith.constant 1.000000e+00 : f32
    %174 = vector.broadcast %cst_38 : f32 to vector<2x32xf32>
    %175 = arith.addf %174, %173 : vector<2x32xf32>
    %176 = arith.divf %174, %175 : vector<2x32xf32>
    %177 = arith.mulf %168, %122 : vector<2x32xf32>
    %178 = arith.mulf %162, %170 : vector<2x32xf32>
    %179 = arith.addf %177, %178 : vector<2x32xf32>
    %180 = math.tanh %179 : vector<2x32xf32>
    %181 = arith.mulf %176, %180 : vector<2x32xf32>
    %c4 = arith.constant 4 : index
    %c0_39 = arith.constant 0 : index
    %182 = vector.load %arg9[%c4, %c0_39] : memref<16x32xf32, #tpu.memory_space<vmem>>, vector<2x32xf32>
    tpu.vector_store %arg9[%c4, %c0_39], %181 {strides = array<i32>} : memref<16x32xf32, #tpu.memory_space<vmem>>, vector<2x32xf32>,
    %183 = vector.extract_strided_slice %5 {offsets = [6, 0], sizes = [2, 128], strides = [1, 1]} : vector<16x128xf32> to vector<2x128xf32>
    %cst_40 = arith.constant dense<0.000000e+00> : vector<2x128xf32>
    %184 = tpu.matmul %153, %6, %cst_40 {dimension_numbers = #tpu.dot_dimension_numbers<[1], [0], [0], [1], [0, 0, 1, 1], [], []>} : vector<2x32xf32>, vector<32x128xf32>, vector<2x128xf32> -> vector<2x128xf32>
    %185 = arith.addf %183, %184 : vector<2x128xf32>
    %186 = vector.extract_strided_slice %185 {offsets = [0, 0], sizes = [2, 32], strides = [1, 1]} : vector<2x128xf32> to vector<2x32xf32>
    %187 = arith.negf %186 : vector<2x32xf32>
    %188 = math.exp %187 : vector<2x32xf32>
    %cst_41 = arith.constant 1.000000e+00 : f32
    %189 = vector.broadcast %cst_41 : f32 to vector<2x32xf32>
    %190 = arith.addf %189, %188 : vector<2x32xf32>
    %191 = arith.divf %189, %190 : vector<2x32xf32>
    %192 = vector.extract_strided_slice %185 {offsets = [0, 32], sizes = [2, 32], strides = [1, 1]} : vector<2x128xf32> to vector<2x32xf32>
    %193 = arith.negf %192 : vector<2x32xf32>
    %194 = math.exp %193 : vector<2x32xf32>
    %cst_42 = arith.constant 1.000000e+00 : f32
    %195 = vector.broadcast %cst_42 : f32 to vector<2x32xf32>
    %196 = arith.addf %195, %194 : vector<2x32xf32>
    %197 = arith.divf %195, %196 : vector<2x32xf32>
    %198 = vector.extract_strided_slice %185 {offsets = [0, 64], sizes = [2, 32], strides = [1, 1]} : vector<2x128xf32> to vector<2x32xf32>
    %199 = math.tanh %198 : vector<2x32xf32>
    %200 = vector.extract_strided_slice %185 {offsets = [0, 96], sizes = [2, 32], strides = [1, 1]} : vector<2x128xf32> to vector<2x32xf32>
    %201 = arith.negf %200 : vector<2x32xf32>
    %202 = math.exp %201 : vector<2x32xf32>
    %cst_43 = arith.constant 1.000000e+00 : f32
    %203 = vector.broadcast %cst_43 : f32 to vector<2x32xf32>
    %204 = arith.addf %203, %202 : vector<2x32xf32>
    %205 = arith.divf %203, %204 : vector<2x32xf32>
    %206 = arith.mulf %197, %151 : vector<2x32xf32>
    %207 = arith.mulf %191, %199 : vector<2x32xf32>
    %208 = arith.addf %206, %207 : vector<2x32xf32>
    %209 = math.tanh %208 : vector<2x32xf32>
    %210 = arith.mulf %205, %209 : vector<2x32xf32>
    %211 = tpu.concatenate %210, %181 in 1 : vector<2x32xf32>, vector<2x32xf32> -> vector<2x64xf32>
    %cst_44 = arith.constant dense<0.000000e+00> : vector<2x128xf32>
    %212 = tpu.matmul %211, %7, %cst_44 {dimension_numbers = #tpu.dot_dimension_numbers<[1], [0], [0], [1], [0, 0, 1, 1], [], []>} : vector<2x64xf32>, vector<64x128xf32>, vector<2x128xf32> -> vector<2x128xf32>
    %213 = arith.addf %212, %10 : vector<2x128xf32>
    %214 = vector.extract_strided_slice %213 {offsets = [0, 0], sizes = [2, 32], strides = [1, 1]} : vector<2x128xf32> to vector<2x32xf32>
    %215 = arith.negf %214 : vector<2x32xf32>
    %216 = math.exp %215 : vector<2x32xf32>
    %cst_45 = arith.constant 1.000000e+00 : f32
    %217 = vector.broadcast %cst_45 : f32 to vector<2x32xf32>
    %218 = arith.addf %217, %216 : vector<2x32xf32>
    %219 = arith.divf %217, %218 : vector<2x32xf32>
    %220 = vector.extract_strided_slice %213 {offsets = [0, 32], sizes = [2, 32], strides = [1, 1]} : vector<2x128xf32> to vector<2x32xf32>
    %221 = arith.negf %220 : vector<2x32xf32>
    %222 = math.exp %221 : vector<2x32xf32>
    %cst_46 = arith.constant 1.000000e+00 : f32
    %223 = vector.broadcast %cst_46 : f32 to vector<2x32xf32>
    %224 = arith.addf %223, %222 : vector<2x32xf32>
    %225 = arith.divf %223, %224 : vector<2x32xf32>
    %226 = vector.extract_strided_slice %213 {offsets = [0, 64], sizes = [2, 32], strides = [1, 1]} : vector<2x128xf32> to vector<2x32xf32>
    %227 = math.tanh %226 : vector<2x32xf32>
    %228 = vector.extract_strided_slice %213 {offsets = [0, 96], sizes = [2, 32], strides = [1, 1]} : vector<2x128xf32> to vector<2x32xf32>
    %229 = arith.negf %228 : vector<2x32xf32>
    %230 = math.exp %229 : vector<2x32xf32>
    %cst_47 = arith.constant 1.000000e+00 : f32
    %231 = vector.broadcast %cst_47 : f32 to vector<2x32xf32>
    %232 = arith.addf %231, %230 : vector<2x32xf32>
    %233 = arith.divf %231, %232 : vector<2x32xf32>
    %234 = arith.mulf %225, %179 : vector<2x32xf32>
    %235 = arith.mulf %219, %227 : vector<2x32xf32>
    %236 = arith.addf %234, %235 : vector<2x32xf32>
    %237 = math.tanh %236 : vector<2x32xf32>
    %238 = arith.mulf %233, %237 : vector<2x32xf32>
    %c6 = arith.constant 6 : index
    %c0_48 = arith.constant 0 : index
    %239 = vector.load %arg9[%c6, %c0_48] : memref<16x32xf32, #tpu.memory_space<vmem>>, vector<2x32xf32>
    tpu.vector_store %arg9[%c6, %c0_48], %238 {strides = array<i32>} : memref<16x32xf32, #tpu.memory_space<vmem>>, vector<2x32xf32>,
    %240 = vector.extract_strided_slice %5 {offsets = [8, 0], sizes = [2, 128], strides = [1, 1]} : vector<16x128xf32> to vector<2x128xf32>
    %cst_49 = arith.constant dense<0.000000e+00> : vector<2x128xf32>
    %241 = tpu.matmul %210, %6, %cst_49 {dimension_numbers = #tpu.dot_dimension_numbers<[1], [0], [0], [1], [0, 0, 1, 1], [], []>} : vector<2x32xf32>, vector<32x128xf32>, vector<2x128xf32> -> vector<2x128xf32>
    %242 = arith.addf %240, %241 : vector<2x128xf32>
    %243 = vector.extract_strided_slice %242 {offsets = [0, 0], sizes = [2, 32], strides = [1, 1]} : vector<2x128xf32> to vector<2x32xf32>
    %244 = arith.negf %243 : vector<2x32xf32>
    %245 = math.exp %244 : vector<2x32xf32>
    %cst_50 = arith.constant 1.000000e+00 : f32
    %246 = vector.broadcast %cst_50 : f32 to vector<2x32xf32>
    %247 = arith.addf %246, %245 : vector<2x32xf32>
    %248 = arith.divf %246, %247 : vector<2x32xf32>
    %249 = vector.extract_strided_slice %242 {offsets = [0, 32], sizes = [2, 32], strides = [1, 1]} : vector<2x128xf32> to vector<2x32xf32>
    %250 = arith.negf %249 : vector<2x32xf32>
    %251 = math.exp %250 : vector<2x32xf32>
    %cst_51 = arith.constant 1.000000e+00 : f32
    %252 = vector.broadcast %cst_51 : f32 to vector<2x32xf32>
    %253 = arith.addf %252, %251 : vector<2x32xf32>
    %254 = arith.divf %252, %253 : vector<2x32xf32>
    %255 = vector.extract_strided_slice %242 {offsets = [0, 64], sizes = [2, 32], strides = [1, 1]} : vector<2x128xf32> to vector<2x32xf32>
    %256 = math.tanh %255 : vector<2x32xf32>
    %257 = vector.extract_strided_slice %242 {offsets = [0, 96], sizes = [2, 32], strides = [1, 1]} : vector<2x128xf32> to vector<2x32xf32>
    %258 = arith.negf %257 : vector<2x32xf32>
    %259 = math.exp %258 : vector<2x32xf32>
    %cst_52 = arith.constant 1.000000e+00 : f32
    %260 = vector.broadcast %cst_52 : f32 to vector<2x32xf32>
    %261 = arith.addf %260, %259 : vector<2x32xf32>
    %262 = arith.divf %260, %261 : vector<2x32xf32>
    %263 = arith.mulf %254, %208 : vector<2x32xf32>
    %264 = arith.mulf %248, %256 : vector<2x32xf32>
    %265 = arith.addf %263, %264 : vector<2x32xf32>
    %266 = math.tanh %265 : vector<2x32xf32>
    %267 = arith.mulf %262, %266 : vector<2x32xf32>
    %268 = tpu.concatenate %267, %238 in 1 : vector<2x32xf32>, vector<2x32xf32> -> vector<2x64xf32>
    %cst_53 = arith.constant dense<0.000000e+00> : vector<2x128xf32>
    %269 = tpu.matmul %268, %7, %cst_53 {dimension_numbers = #tpu.dot_dimension_numbers<[1], [0], [0], [1], [0, 0, 1, 1], [], []>} : vector<2x64xf32>, vector<64x128xf32>, vector<2x128xf32> -> vector<2x128xf32>
    %270 = arith.addf %269, %10 : vector<2x128xf32>
    %271 = vector.extract_strided_slice %270 {offsets = [0, 0], sizes = [2, 32], strides = [1, 1]} : vector<2x128xf32> to vector<2x32xf32>
    %272 = arith.negf %271 : vector<2x32xf32>
    %273 = math.exp %272 : vector<2x32xf32>
    %cst_54 = arith.constant 1.000000e+00 : f32
    %274 = vector.broadcast %cst_54 : f32 to vector<2x32xf32>
    %275 = arith.addf %274, %273 : vector<2x32xf32>
    %276 = arith.divf %274, %275 : vector<2x32xf32>
    %277 = vector.extract_strided_slice %270 {offsets = [0, 32], sizes = [2, 32], strides = [1, 1]} : vector<2x128xf32> to vector<2x32xf32>
    %278 = arith.negf %277 : vector<2x32xf32>
    %279 = math.exp %278 : vector<2x32xf32>
    %cst_55 = arith.constant 1.000000e+00 : f32
    %280 = vector.broadcast %cst_55 : f32 to vector<2x32xf32>
    %281 = arith.addf %280, %279 : vector<2x32xf32>
    %282 = arith.divf %280, %281 : vector<2x32xf32>
    %283 = vector.extract_strided_slice %270 {offsets = [0, 64], sizes = [2, 32], strides = [1, 1]} : vector<2x128xf32> to vector<2x32xf32>
    %284 = math.tanh %283 : vector<2x32xf32>
    %285 = vector.extract_strided_slice %270 {offsets = [0, 96], sizes = [2, 32], strides = [1, 1]} : vector<2x128xf32> to vector<2x32xf32>
    %286 = arith.negf %285 : vector<2x32xf32>
    %287 = math.exp %286 : vector<2x32xf32>
    %cst_56 = arith.constant 1.000000e+00 : f32
    %288 = vector.broadcast %cst_56 : f32 to vector<2x32xf32>
    %289 = arith.addf %288, %287 : vector<2x32xf32>
    %290 = arith.divf %288, %289 : vector<2x32xf32>
    %291 = arith.mulf %282, %236 : vector<2x32xf32>
    %292 = arith.mulf %276, %284 : vector<2x32xf32>
    %293 = arith.addf %291, %292 : vector<2x32xf32>
    %294 = math.tanh %293 : vector<2x32xf32>
    %295 = arith.mulf %290, %294 : vector<2x32xf32>
    %c8 = arith.constant 8 : index
    %c0_57 = arith.constant 0 : index
    %296 = vector.load %arg9[%c8, %c0_57] : memref<16x32xf32, #tpu.memory_space<vmem>>, vector<2x32xf32>
    tpu.vector_store %arg9[%c8, %c0_57], %295 {strides = array<i32>} : memref<16x32xf32, #tpu.memory_space<vmem>>, vector<2x32xf32>,
    %297 = vector.extract_strided_slice %5 {offsets = [10, 0], sizes = [2, 128], strides = [1, 1]} : vector<16x128xf32> to vector<2x128xf32>
    %cst_58 = arith.constant dense<0.000000e+00> : vector<2x128xf32>
    %298 = tpu.matmul %267, %6, %cst_58 {dimension_numbers = #tpu.dot_dimension_numbers<[1], [0], [0], [1], [0, 0, 1, 1], [], []>} : vector<2x32xf32>, vector<32x128xf32>, vector<2x128xf32> -> vector<2x128xf32>
    %299 = arith.addf %297, %298 : vector<2x128xf32>
    %300 = vector.extract_strided_slice %299 {offsets = [0, 0], sizes = [2, 32], strides = [1, 1]} : vector<2x128xf32> to vector<2x32xf32>
    %301 = arith.negf %300 : vector<2x32xf32>
    %302 = math.exp %301 : vector<2x32xf32>
    %cst_59 = arith.constant 1.000000e+00 : f32
    %303 = vector.broadcast %cst_59 : f32 to vector<2x32xf32>
    %304 = arith.addf %303, %302 : vector<2x32xf32>
    %305 = arith.divf %303, %304 : vector<2x32xf32>
    %306 = vector.extract_strided_slice %299 {offsets = [0, 32], sizes = [2, 32], strides = [1, 1]} : vector<2x128xf32> to vector<2x32xf32>
    %307 = arith.negf %306 : vector<2x32xf32>
    %308 = math.exp %307 : vector<2x32xf32>
    %cst_60 = arith.constant 1.000000e+00 : f32
    %309 = vector.broadcast %cst_60 : f32 to vector<2x32xf32>
    %310 = arith.addf %309, %308 : vector<2x32xf32>
    %311 = arith.divf %309, %310 : vector<2x32xf32>
    %312 = vector.extract_strided_slice %299 {offsets = [0, 64], sizes = [2, 32], strides = [1, 1]} : vector<2x128xf32> to vector<2x32xf32>
    %313 = math.tanh %312 : vector<2x32xf32>
    %314 = vector.extract_strided_slice %299 {offsets = [0, 96], sizes = [2, 32], strides = [1, 1]} : vector<2x128xf32> to vector<2x32xf32>
    %315 = arith.negf %314 : vector<2x32xf32>
    %316 = math.exp %315 : vector<2x32xf32>
    %cst_61 = arith.constant 1.000000e+00 : f32
    %317 = vector.broadcast %cst_61 : f32 to vector<2x32xf32>
    %318 = arith.addf %317, %316 : vector<2x32xf32>
    %319 = arith.divf %317, %318 : vector<2x32xf32>
    %320 = arith.mulf %311, %265 : vector<2x32xf32>
    %321 = arith.mulf %305, %313 : vector<2x32xf32>
    %322 = arith.addf %320, %321 : vector<2x32xf32>
    %323 = math.tanh %322 : vector<2x32xf32>
    %324 = arith.mulf %319, %323 : vector<2x32xf32>
    %325 = tpu.concatenate %324, %295 in 1 : vector<2x32xf32>, vector<2x32xf32> -> vector<2x64xf32>
    %cst_62 = arith.constant dense<0.000000e+00> : vector<2x128xf32>
    %326 = tpu.matmul %325, %7, %cst_62 {dimension_numbers = #tpu.dot_dimension_numbers<[1], [0], [0], [1], [0, 0, 1, 1], [], []>} : vector<2x64xf32>, vector<64x128xf32>, vector<2x128xf32> -> vector<2x128xf32>
    %327 = arith.addf %326, %10 : vector<2x128xf32>
    %328 = vector.extract_strided_slice %327 {offsets = [0, 0], sizes = [2, 32], strides = [1, 1]} : vector<2x128xf32> to vector<2x32xf32>
    %329 = arith.negf %328 : vector<2x32xf32>
    %330 = math.exp %329 : vector<2x32xf32>
    %cst_63 = arith.constant 1.000000e+00 : f32
    %331 = vector.broadcast %cst_63 : f32 to vector<2x32xf32>
    %332 = arith.addf %331, %330 : vector<2x32xf32>
    %333 = arith.divf %331, %332 : vector<2x32xf32>
    %334 = vector.extract_strided_slice %327 {offsets = [0, 32], sizes = [2, 32], strides = [1, 1]} : vector<2x128xf32> to vector<2x32xf32>
    %335 = arith.negf %334 : vector<2x32xf32>
    %336 = math.exp %335 : vector<2x32xf32>
    %cst_64 = arith.constant 1.000000e+00 : f32
    %337 = vector.broadcast %cst_64 : f32 to vector<2x32xf32>
    %338 = arith.addf %337, %336 : vector<2x32xf32>
    %339 = arith.divf %337, %338 : vector<2x32xf32>
    %340 = vector.extract_strided_slice %327 {offsets = [0, 64], sizes = [2, 32], strides = [1, 1]} : vector<2x128xf32> to vector<2x32xf32>
    %341 = math.tanh %340 : vector<2x32xf32>
    %342 = vector.extract_strided_slice %327 {offsets = [0, 96], sizes = [2, 32], strides = [1, 1]} : vector<2x128xf32> to vector<2x32xf32>
    %343 = arith.negf %342 : vector<2x32xf32>
    %344 = math.exp %343 : vector<2x32xf32>
    %cst_65 = arith.constant 1.000000e+00 : f32
    %345 = vector.broadcast %cst_65 : f32 to vector<2x32xf32>
    %346 = arith.addf %345, %344 : vector<2x32xf32>
    %347 = arith.divf %345, %346 : vector<2x32xf32>
    %348 = arith.mulf %339, %293 : vector<2x32xf32>
    %349 = arith.mulf %333, %341 : vector<2x32xf32>
    %350 = arith.addf %348, %349 : vector<2x32xf32>
    %351 = math.tanh %350 : vector<2x32xf32>
    %352 = arith.mulf %347, %351 : vector<2x32xf32>
    %c10 = arith.constant 10 : index
    %c0_66 = arith.constant 0 : index
    %353 = vector.load %arg9[%c10, %c0_66] : memref<16x32xf32, #tpu.memory_space<vmem>>, vector<2x32xf32>
    tpu.vector_store %arg9[%c10, %c0_66], %352 {strides = array<i32>} : memref<16x32xf32, #tpu.memory_space<vmem>>, vector<2x32xf32>,
    %354 = vector.extract_strided_slice %5 {offsets = [12, 0], sizes = [2, 128], strides = [1, 1]} : vector<16x128xf32> to vector<2x128xf32>
    %cst_67 = arith.constant dense<0.000000e+00> : vector<2x128xf32>
    %355 = tpu.matmul %324, %6, %cst_67 {dimension_numbers = #tpu.dot_dimension_numbers<[1], [0], [0], [1], [0, 0, 1, 1], [], []>} : vector<2x32xf32>, vector<32x128xf32>, vector<2x128xf32> -> vector<2x128xf32>
    %356 = arith.addf %354, %355 : vector<2x128xf32>
    %357 = vector.extract_strided_slice %356 {offsets = [0, 0], sizes = [2, 32], strides = [1, 1]} : vector<2x128xf32> to vector<2x32xf32>
    %358 = arith.negf %357 : vector<2x32xf32>
    %359 = math.exp %358 : vector<2x32xf32>
    %cst_68 = arith.constant 1.000000e+00 : f32
    %360 = vector.broadcast %cst_68 : f32 to vector<2x32xf32>
    %361 = arith.addf %360, %359 : vector<2x32xf32>
    %362 = arith.divf %360, %361 : vector<2x32xf32>
    %363 = vector.extract_strided_slice %356 {offsets = [0, 32], sizes = [2, 32], strides = [1, 1]} : vector<2x128xf32> to vector<2x32xf32>
    %364 = arith.negf %363 : vector<2x32xf32>
    %365 = math.exp %364 : vector<2x32xf32>
    %cst_69 = arith.constant 1.000000e+00 : f32
    %366 = vector.broadcast %cst_69 : f32 to vector<2x32xf32>
    %367 = arith.addf %366, %365 : vector<2x32xf32>
    %368 = arith.divf %366, %367 : vector<2x32xf32>
    %369 = vector.extract_strided_slice %356 {offsets = [0, 64], sizes = [2, 32], strides = [1, 1]} : vector<2x128xf32> to vector<2x32xf32>
    %370 = math.tanh %369 : vector<2x32xf32>
    %371 = vector.extract_strided_slice %356 {offsets = [0, 96], sizes = [2, 32], strides = [1, 1]} : vector<2x128xf32> to vector<2x32xf32>
    %372 = arith.negf %371 : vector<2x32xf32>
    %373 = math.exp %372 : vector<2x32xf32>
    %cst_70 = arith.constant 1.000000e+00 : f32
    %374 = vector.broadcast %cst_70 : f32 to vector<2x32xf32>
    %375 = arith.addf %374, %373 : vector<2x32xf32>
    %376 = arith.divf %374, %375 : vector<2x32xf32>
    %377 = arith.mulf %368, %322 : vector<2x32xf32>
    %378 = arith.mulf %362, %370 : vector<2x32xf32>
    %379 = arith.addf %377, %378 : vector<2x32xf32>
    %380 = math.tanh %379 : vector<2x32xf32>
    %381 = arith.mulf %376, %380 : vector<2x32xf32>
    %382 = tpu.concatenate %381, %352 in 1 : vector<2x32xf32>, vector<2x32xf32> -> vector<2x64xf32>
    %cst_71 = arith.constant dense<0.000000e+00> : vector<2x128xf32>
    %383 = tpu.matmul %382, %7, %cst_71 {dimension_numbers = #tpu.dot_dimension_numbers<[1], [0], [0], [1], [0, 0, 1, 1], [], []>} : vector<2x64xf32>, vector<64x128xf32>, vector<2x128xf32> -> vector<2x128xf32>
    %384 = arith.addf %383, %10 : vector<2x128xf32>
    %385 = vector.extract_strided_slice %384 {offsets = [0, 0], sizes = [2, 32], strides = [1, 1]} : vector<2x128xf32> to vector<2x32xf32>
    %386 = arith.negf %385 : vector<2x32xf32>
    %387 = math.exp %386 : vector<2x32xf32>
    %cst_72 = arith.constant 1.000000e+00 : f32
    %388 = vector.broadcast %cst_72 : f32 to vector<2x32xf32>
    %389 = arith.addf %388, %387 : vector<2x32xf32>
    %390 = arith.divf %388, %389 : vector<2x32xf32>
    %391 = vector.extract_strided_slice %384 {offsets = [0, 32], sizes = [2, 32], strides = [1, 1]} : vector<2x128xf32> to vector<2x32xf32>
    %392 = arith.negf %391 : vector<2x32xf32>
    %393 = math.exp %392 : vector<2x32xf32>
    %cst_73 = arith.constant 1.000000e+00 : f32
    %394 = vector.broadcast %cst_73 : f32 to vector<2x32xf32>
    %395 = arith.addf %394, %393 : vector<2x32xf32>
    %396 = arith.divf %394, %395 : vector<2x32xf32>
    %397 = vector.extract_strided_slice %384 {offsets = [0, 64], sizes = [2, 32], strides = [1, 1]} : vector<2x128xf32> to vector<2x32xf32>
    %398 = math.tanh %397 : vector<2x32xf32>
    %399 = vector.extract_strided_slice %384 {offsets = [0, 96], sizes = [2, 32], strides = [1, 1]} : vector<2x128xf32> to vector<2x32xf32>
    %400 = arith.negf %399 : vector<2x32xf32>
    %401 = math.exp %400 : vector<2x32xf32>
    %cst_74 = arith.constant 1.000000e+00 : f32
    %402 = vector.broadcast %cst_74 : f32 to vector<2x32xf32>
    %403 = arith.addf %402, %401 : vector<2x32xf32>
    %404 = arith.divf %402, %403 : vector<2x32xf32>
    %405 = arith.mulf %396, %350 : vector<2x32xf32>
    %406 = arith.mulf %390, %398 : vector<2x32xf32>
    %407 = arith.addf %405, %406 : vector<2x32xf32>
    %408 = math.tanh %407 : vector<2x32xf32>
    %409 = arith.mulf %404, %408 : vector<2x32xf32>
    %c12 = arith.constant 12 : index
    %c0_75 = arith.constant 0 : index
    %410 = vector.load %arg9[%c12, %c0_75] : memref<16x32xf32, #tpu.memory_space<vmem>>, vector<2x32xf32>
    tpu.vector_store %arg9[%c12, %c0_75], %409 {strides = array<i32>} : memref<16x32xf32, #tpu.memory_space<vmem>>, vector<2x32xf32>,
    %411 = vector.extract_strided_slice %5 {offsets = [14, 0], sizes = [2, 128], strides = [1, 1]} : vector<16x128xf32> to vector<2x128xf32>
    %cst_76 = arith.constant dense<0.000000e+00> : vector<2x128xf32>
    %412 = tpu.matmul %381, %6, %cst_76 {dimension_numbers = #tpu.dot_dimension_numbers<[1], [0], [0], [1], [0, 0, 1, 1], [], []>} : vector<2x32xf32>, vector<32x128xf32>, vector<2x128xf32> -> vector<2x128xf32>
    %413 = arith.addf %411, %412 : vector<2x128xf32>
    %414 = vector.extract_strided_slice %413 {offsets = [0, 0], sizes = [2, 32], strides = [1, 1]} : vector<2x128xf32> to vector<2x32xf32>
    %415 = arith.negf %414 : vector<2x32xf32>
    %416 = math.exp %415 : vector<2x32xf32>
    %cst_77 = arith.constant 1.000000e+00 : f32
    %417 = vector.broadcast %cst_77 : f32 to vector<2x32xf32>
    %418 = arith.addf %417, %416 : vector<2x32xf32>
    %419 = arith.divf %417, %418 : vector<2x32xf32>
    %420 = vector.extract_strided_slice %413 {offsets = [0, 32], sizes = [2, 32], strides = [1, 1]} : vector<2x128xf32> to vector<2x32xf32>
    %421 = arith.negf %420 : vector<2x32xf32>
    %422 = math.exp %421 : vector<2x32xf32>
    %cst_78 = arith.constant 1.000000e+00 : f32
    %423 = vector.broadcast %cst_78 : f32 to vector<2x32xf32>
    %424 = arith.addf %423, %422 : vector<2x32xf32>
    %425 = arith.divf %423, %424 : vector<2x32xf32>
    %426 = vector.extract_strided_slice %413 {offsets = [0, 64], sizes = [2, 32], strides = [1, 1]} : vector<2x128xf32> to vector<2x32xf32>
    %427 = math.tanh %426 : vector<2x32xf32>
    %428 = vector.extract_strided_slice %413 {offsets = [0, 96], sizes = [2, 32], strides = [1, 1]} : vector<2x128xf32> to vector<2x32xf32>
    %429 = arith.negf %428 : vector<2x32xf32>
    %430 = math.exp %429 : vector<2x32xf32>
    %cst_79 = arith.constant 1.000000e+00 : f32
    %431 = vector.broadcast %cst_79 : f32 to vector<2x32xf32>
    %432 = arith.addf %431, %430 : vector<2x32xf32>
    %433 = arith.divf %431, %432 : vector<2x32xf32>
    %434 = arith.mulf %425, %379 : vector<2x32xf32>
    %435 = arith.mulf %419, %427 : vector<2x32xf32>
    %436 = arith.addf %434, %435 : vector<2x32xf32>
    %437 = math.tanh %436 : vector<2x32xf32>
    %438 = arith.mulf %433, %437 : vector<2x32xf32>
    %439 = tpu.concatenate %438, %409 in 1 : vector<2x32xf32>, vector<2x32xf32> -> vector<2x64xf32>
    %cst_80 = arith.constant dense<0.000000e+00> : vector<2x128xf32>
    %440 = tpu.matmul %439, %7, %cst_80 {dimension_numbers = #tpu.dot_dimension_numbers<[1], [0], [0], [1], [0, 0, 1, 1], [], []>} : vector<2x64xf32>, vector<64x128xf32>, vector<2x128xf32> -> vector<2x128xf32>
    %441 = arith.addf %440, %10 : vector<2x128xf32>
    %442 = vector.extract_strided_slice %441 {offsets = [0, 0], sizes = [2, 32], strides = [1, 1]} : vector<2x128xf32> to vector<2x32xf32>
    %443 = arith.negf %442 : vector<2x32xf32>
    %444 = math.exp %443 : vector<2x32xf32>
    %cst_81 = arith.constant 1.000000e+00 : f32
    %445 = vector.broadcast %cst_81 : f32 to vector<2x32xf32>
    %446 = arith.addf %445, %444 : vector<2x32xf32>
    %447 = arith.divf %445, %446 : vector<2x32xf32>
    %448 = vector.extract_strided_slice %441 {offsets = [0, 32], sizes = [2, 32], strides = [1, 1]} : vector<2x128xf32> to vector<2x32xf32>
    %449 = arith.negf %448 : vector<2x32xf32>
    %450 = math.exp %449 : vector<2x32xf32>
    %cst_82 = arith.constant 1.000000e+00 : f32
    %451 = vector.broadcast %cst_82 : f32 to vector<2x32xf32>
    %452 = arith.addf %451, %450 : vector<2x32xf32>
    %453 = arith.divf %451, %452 : vector<2x32xf32>
    %454 = vector.extract_strided_slice %441 {offsets = [0, 64], sizes = [2, 32], strides = [1, 1]} : vector<2x128xf32> to vector<2x32xf32>
    %455 = math.tanh %454 : vector<2x32xf32>
    %456 = vector.extract_strided_slice %441 {offsets = [0, 96], sizes = [2, 32], strides = [1, 1]} : vector<2x128xf32> to vector<2x32xf32>
    %457 = arith.negf %456 : vector<2x32xf32>
    %458 = math.exp %457 : vector<2x32xf32>
    %cst_83 = arith.constant 1.000000e+00 : f32
    %459 = vector.broadcast %cst_83 : f32 to vector<2x32xf32>
    %460 = arith.addf %459, %458 : vector<2x32xf32>
    %461 = arith.divf %459, %460 : vector<2x32xf32>
    %462 = arith.mulf %453, %407 : vector<2x32xf32>
    %463 = arith.mulf %447, %455 : vector<2x32xf32>
    %464 = arith.addf %462, %463 : vector<2x32xf32>
    %465 = math.tanh %464 : vector<2x32xf32>
    %466 = arith.mulf %461, %465 : vector<2x32xf32>
    %c14 = arith.constant 14 : index
    %c0_84 = arith.constant 0 : index
    %467 = vector.load %arg9[%c14, %c0_84] : memref<16x32xf32, #tpu.memory_space<vmem>>, vector<2x32xf32>
    tpu.vector_store %arg9[%c14, %c0_84], %466 {strides = array<i32>} : memref<16x32xf32, #tpu.memory_space<vmem>>, vector<2x32xf32>,
    %c0_85 = arith.constant 0 : index
    %c0_86 = arith.constant 0 : index
    %468 = vector.load %arg9[%c0_85, %c0_86] : memref<16x32xf32, #tpu.memory_space<vmem>>, vector<16x32xf32>
    %c0_87 = arith.constant 0 : index
    %c0_88 = arith.constant 0 : index
    %469 = vector.load %arg6[%c0_87, %c0_88] : memref<32x1xf32, #tpu.memory_space<vmem>>, vector<32x1xf32>
    %cst_89 = arith.constant dense<0.000000e+00> : vector<16x1xf32>
    %470 = tpu.matmul %468, %469, %cst_89 {dimension_numbers = #tpu.dot_dimension_numbers<[1], [0], [0], [1], [0, 0, 1, 1], [], []>} : vector<16x32xf32>, vector<32x1xf32>, vector<16x1xf32> -> vector<16x1xf32>
    %c0_90 = arith.constant 0 : index
    %c0_91 = arith.constant 0 : index
    %471 = vector.load %arg7[%c0_90, %c0_91] : memref<1x1xf32, #tpu.memory_space<vmem>>, vector<1x1xf32>
    %472 = vector.broadcast %471 : vector<1x1xf32> to vector<16x1xf32>
    %473 = arith.addf %470, %472 : vector<16x1xf32>
    %c0_92 = arith.constant 0 : index
    %c0_93 = arith.constant 0 : index
    %474 = vector.load %arg8[%c0_92, %c0_93] : memref<16x1xf32, #tpu.memory_space<vmem>>, vector<16x1xf32>
    tpu.vector_store %arg8[%c0_92, %c0_93], %473 {strides = array<i32>} : memref<16x1xf32, #tpu.memory_space<vmem>>, vector<16x1xf32>,
    return
  }
}

</mosaic_0001>

<llo_original>
// kernel: tpu_custom_call.1
$region0: #{tpu_custom_call.1}
  #allocation0 [shape = 'u32[]', space=smem, size = 0x4, offset = 0x4, fixed_abs, tag = 'smem constant byte address 0x4 - core index']
  #allocation1 [shape = 'u32[144,128]{1,0:T(1,128)}', space=vmem, size = 0x12000, scoped, tag = 'internal scratch']
  #allocation2 [shape = 'f32[16,32]{1,0:T(8,128)}', space=vmem, size = 0x2000, scoped, tag = 'scratch operand']
  #allocation3 [shape = 'f32[1,1]{1,0:T(1,128)S(1)}', space=vmem, size = 0x200, scoped, tag = 'scoped memory for tpu_custom_call.1']
  %s0 = inlined_call_operand.vmem [shape: f32[16,1], index: 0, kind: input, shape index: {}]
  %s1 = inlined_call_operand.vmem [shape: f32[1,128], index: 1, kind: input, shape index: {}]
  %s2 = inlined_call_operand.vmem [shape: f32[32,128], index: 2, kind: input, shape index: {}]
  %s3 = inlined_call_operand.vmem [shape: f32[1,128], index: 3, kind: input, shape index: {}]
  %s4 = inlined_call_operand.hbm [shape: f32[64,128], index: 4, kind: input, shape index: {}]
  %s5 = inlined_call_operand.vmem [shape: f32[1,128], index: 5, kind: input, shape index: {}]
  %s6 = inlined_call_operand.vmem [shape: f32[32,1], index: 6, kind: input, shape index: {}]
  %s7 = inlined_call_operand.<no memory space> [shape: f32[1,1], index: 7, kind: input, shape index: {}]
  %s8 = inlined_call_operand.vmem [shape: f32[16,1], index: 8, kind: output, shape index: {}]
  %s9 = sld [smem:[#allocation0]]
  $region46: #{tpu_custom_call.1} parent=0
    _
  %s11 = ssub.s32 1, %s9
  %s12 = scalar_select 0, %s11, %s9
  %v13 = vstv %s7
  %14 = vst [vmem:[#allocation3] sm:$0x1] %v13
  $region1: #{tpu_custom_call.1} parent=0
    #allocation4 [shape = 'u8[32768]{0}', space=vmem, size = 0x8000, scoped, tag = 'input window, operand 4, single buffered']
    #allocation5 [shape = 's32[1]{0}', space=sflag, size = 0x4, scoped, tag = 'scoped memory for tpu_custom_call.1']
    %15 = vsyncpa [#allocation5], 0
    // Predicated region
    $region2: #{tpu_custom_call.1} parent=1 // pred_check
      _
    $region3: #{tpu_custom_call.1} parent=1 // pred_check_branch
      %17 = sbr.rel (0) target = $region5
    $region4: #{tpu_custom_call.1} parent=1 // pred_region
      _
    $region5: #{tpu_custom_call.1} parent=1 // pred_fallthru
      _
    // Predicated region
    $region6: #{tpu_custom_call.1} parent=1 // pred_check
      _
    $region7: #{tpu_custom_call.1} parent=1 // pred_check_branch
      %19 = sbr.rel (0) target = $region9
    $region8: #{tpu_custom_call.1} parent=1 // pred_region
      _
    $region9: #{tpu_custom_call.1} parent=1 // pred_fallthru
      _
    // Predicated region
    $region10: #{tpu_custom_call.1} parent=1 // pred_check
      _
    $region11: #{tpu_custom_call.1} parent=1 // pred_check_branch
      %21 = sbr.rel (0) target = $region13
    $region12: #{tpu_custom_call.1} parent=1 // pred_region
      _
    $region13: #{tpu_custom_call.1} parent=1 // pred_fallthru
      _
    // Predicated region
    $region14: #{tpu_custom_call.1} parent=1 // pred_check
      _
    $region15: #{tpu_custom_call.1} parent=1 // pred_check_branch
      %23 = sbr.rel (0) target = $region17
    $region16: #{tpu_custom_call.1} parent=1 // pred_region
      _
    $region17: #{tpu_custom_call.1} parent=1 // pred_fallthru
      _
    // Predicated region
    $region18: #{tpu_custom_call.1} parent=1 // pred_check
      _
    $region19: #{tpu_custom_call.1} parent=1 // pred_check_branch
      %25 = sbr.rel (0) target = $region21
    $region20: #{tpu_custom_call.1} parent=1 // pred_region
      %s27 = ssub.s32 1024, 1024
      %28 = vsyncadd [#allocation5], %s27
      %s29 = sshll.u32 [#allocation4], 4
      %s30 = int_to_ptr.vmem [resolvable:$true] %s29
      %35 = dma.hbm_to_vmem [thread:$0]  %s4, 1024, %s30, [#allocation5], 128, 128, 8
    $region21: #{tpu_custom_call.1} parent=1 // pred_fallthru
      _
    // Predicated region
    $region22: #{tpu_custom_call.1} parent=1 // pred_check
      _
    $region23: #{tpu_custom_call.1} parent=1 // pred_check_branch
      %37 = sbr.rel (0) target = $region25
    $region24: #{tpu_custom_call.1} parent=1 // pred_region
      _
    $region25: #{tpu_custom_call.1} parent=1 // pred_fallthru
      _
    // Predicated region
    $region26: #{tpu_custom_call.1} parent=1 // pred_check
      _
    $region27: #{tpu_custom_call.1} parent=1 // pred_check_branch
      %39 = sbr.rel (0) target = $region29
    $region28: #{tpu_custom_call.1} parent=1 // pred_region
      _
    $region29: #{tpu_custom_call.1} parent=1 // pred_fallthru
      _
    // Predicated region
    $region30: #{tpu_custom_call.1} parent=1 // pred_check
      _
    $region31: #{tpu_custom_call.1} parent=1 // pred_check_branch
      %41 = sbr.rel (0) target = $region33
    $region32: #{tpu_custom_call.1} parent=1 // pred_region
      _
    $region33: #{tpu_custom_call.1} parent=1 // pred_fallthru
      _
    // Predicated region
    $region34: #{tpu_custom_call.1} parent=1 // pred_check
      _
    $region35: #{tpu_custom_call.1} parent=1 // pred_check_branch
      %43 = sbr.rel (0) target = $region37
    $region36: #{tpu_custom_call.1} parent=1 // pred_region
      %44 = dma.done [#allocation5], 1024
    $region37: #{tpu_custom_call.1} parent=1 // pred_fallthru
      _
    %v45 = vld [vmem:[%s0] sm:$0xff]
    %v46 = vld [vmem:[%s0 + $0x8] sm:$0xff]
    %v47 = vld [vmem:[%s1] sm:$0x1]
    %v48 = vld [vmem:[%s3] sm:$0x1]
    %v50 = vlaneseq
    %v51 = vshrl.u32 %v50, 7
    %v52 = vsub.s32 0, %v51
    %v53 = vrot.slane %v48, %v52
    %vm55 = vcmask 7168
    %v57 = vsel %vm55, %v45, 0
    %v60 = vsel %vm55, %v46, 0
    %vm62 = vcmask 1040384
    %v64 = vsel %vm62, %v47, 0
    %66 = vmatprep.subr.mxu0 0.0
    %67 = vmatpush1.msra.mxu0 0.0
    %68 = vmatprep.subr.mxu0 0.0
    %69 = vmatpush1.msra.mxu0 0.0
    %70 = vmatprep.subr.mxu0 0.0
    %71 = vmatpush1.msra.mxu0 0.0
    %72 = vmatprep.subr.mxu0 0.0
    %73 = vmatpush1.msra.mxu0 0.0
    %74 = vmatprep.subr.mxu0 0.0
    %75 = vmatpush1.msra.mxu0 0.0
    %76 = vmatprep.subr.mxu0 0.0
    %77 = vmatpush1.msra.mxu0 0.0
    %78 = vmatprep.subr.mxu0 0.0
    %79 = vmatpush1.msra.mxu0 0.0
    %80 = vmatprep.subr.mxu0 0.0
    %81 = vmatpush1.msra.mxu0 0.0
    %82 = vmatprep.subr.mxu0 0.0
    %83 = vmatpush1.msra.mxu0 0.0
    %84 = vmatprep.subr.mxu0 0.0
    %85 = vmatpush1.msra.mxu0 0.0
    %86 = vmatprep.subr.mxu0 0.0
    %87 = vmatpush1.msra.mxu0 0.0
    %88 = vmatprep.subr.mxu0 0.0
    %89 = vmatpush1.msra.mxu0 0.0
    %90 = vmatprep.subr.mxu0 0.0
    %91 = vmatpush1.msra.mxu0 0.0
    %92 = vmatprep.subr.mxu0 0.0
    %93 = vmatpush1.msra.mxu0 0.0
    %94 = vmatprep.subr.mxu0 0.0
    %95 = vmatpush1.msra.mxu0 0.0
    %96 = vmatprep.subr.mxu0 0.0
    %97 = vmatpush1.msra.mxu0 %v64
    %98 = vmatprep.subr.mxu0 0.0
    %99 = vmatpush2.msra.mxu0 0.0
    %100 = vmatprep.subr.mxu0 0.0
    %101 = vmatpush2.msra.mxu0 0.0
    %102 = vmatprep.subr.mxu0 0.0
    %103 = vmatpush2.msra.mxu0 0.0
    %104 = vmatprep.subr.mxu0 0.0
    %105 = vmatpush2.msra.mxu0 0.0
    %106 = vmatprep.subr.mxu0 0.0
    %107 = vmatpush2.msra.mxu0 0.0
    %108 = vmatprep.subr.mxu0 0.0
    %109 = vmatpush2.msra.mxu0 0.0
    %110 = vmatprep.subr.mxu0 0.0
    %111 = vmatpush2.msra.mxu0 0.0
    %112 = vmatprep.subr.mxu0 0.0
    %113 = vmatpush2.msra.mxu0 0.0
    %114 = vmatprep.subr.mxu0 0.0
    %115 = vmatpush2.msra.mxu0 0.0
    %116 = vmatprep.subr.mxu0 0.0
    %117 = vmatpush2.msra.mxu0 0.0
    %118 = vmatprep.subr.mxu0 0.0
    %119 = vmatpush2.msra.mxu0 0.0
    %120 = vmatprep.subr.mxu0 0.0
    %121 = vmatpush2.msra.mxu0 0.0
    %122 = vmatprep.subr.mxu0 0.0
    %123 = vmatpush2.msra.mxu0 0.0
    %124 = vmatprep.subr.mxu0 0.0
    %125 = vmatpush2.msra.mxu0 0.0
    %126 = vmatprep.subr.mxu0 0.0
    %127 = vmatpush2.msra.mxu0 0.0
    %128 = vmatprep.subr.mxu0 0.0
    %129 = vmatpush2.msra.mxu0 0.0
    %130 = vmatprep.mubr.f32.mxu0 0.0
    %131 = vmatmul.mubr.f32.gmra.mxu0 %v57
    %v132 = vpop.f32.mrf.mxu0
    %v133 = vadd.f32 %v53, %v132
    %v134 = vpop.f32.mrf.mxu0
    %135 = vmatprep.mubr.f32.mxu0 0.0
    %136 = vmatmul.mubr.f32.gmra.mxu0 %v60
    %v137 = vpop.f32.mrf.mxu0
    %v138 = vadd.f32 %v53, %v137
    %v139 = vpop.f32.mrf.mxu0
    %140 = vdwg.mxu0
    %v141 = vld [vmem:[%s2] sm:$0xff]
    %v142 = vld [vmem:[%s2 + $0x8] sm:$0xff]
    %v143 = vld [vmem:[%s2 + $0x10] sm:$0xff]
    %v144 = vld [vmem:[%s2 + $0x18] sm:$0xff]
    %v145 = vld [vmem:[#allocation4] sm:$0xff]
    %v146 = vld [vmem:[#allocation4 + $0x8] sm:$0xff]
    %v147 = vld [vmem:[#allocation4 + $0x10] sm:$0xff]
    %v148 = vld [vmem:[#allocation4 + $0x18] sm:$0xff]
    %v149 = vld [vmem:[#allocation4 + $0x20] sm:$0xff]
    %v150 = vld [vmem:[#allocation4 + $0x28] sm:$0xff]
    %v151 = vld [vmem:[#allocation4 + $0x30] sm:$0xff]
    %v152 = vld [vmem:[#allocation4 + $0x38] sm:$0xff]
    %v153 = vld [vmem:[%s5] sm:$0x1]
    %v155 = vlaneseq
    %v156 = vshrl.u32 %v155, 7
    %v157 = vsub.s32 0, %v156
    %v158 = vrot.slane %v153, %v157
    %vm160 = vcmask 261120
    %v162 = vsel %vm160, 0.0, 0
    %164 = vmatprep.subr.mxu0 0.0
    %165 = vmatpush1.msra.mxu0 0.0
    %166 = vmatprep.subr.mxu0 0.0
    %167 = vmatpush1.msra.mxu0 0.0
    %168 = vmatprep.subr.mxu0 0.0
    %169 = vmatpush1.msra.mxu0 0.0
    %170 = vmatprep.subr.mxu0 0.0
    %171 = vmatpush1.msra.mxu0 0.0
    %172 = vmatprep.subr.mxu0 0.0
    %173 = vmatpush1.msra.mxu0 0.0
    %174 = vmatprep.subr.mxu0 0.0
    %175 = vmatpush1.msra.mxu0 0.0
    %176 = vmatprep.subr.mxu0 0.0
    %177 = vmatpush1.msra.mxu0 0.0
    %178 = vmatprep.subr.mxu0 0.0
    %179 = vmatpush1.msra.mxu0 0.0
    %180 = vmatprep.subr.mxu0 0.0
    %181 = vmatpush1.msra.mxu0 0.0
    %182 = vmatprep.subr.mxu0 0.0
    %183 = vmatpush1.msra.mxu0 0.0
    %184 = vmatprep.subr.mxu0 0.0
    %185 = vmatpush1.msra.mxu0 0.0
    %186 = vmatprep.subr.mxu0 0.0
    %187 = vmatpush1.msra.mxu0 0.0
    %188 = vmatprep.subr.mxu0 0.0
    %189 = vmatpush1.msra.mxu0 %v144
    %190 = vmatprep.subr.mxu0 0.0
    %191 = vmatpush1.msra.mxu0 %v143
    %192 = vmatprep.subr.mxu0 0.0
    %193 = vmatpush1.msra.mxu0 %v142
    %194 = vmatprep.subr.mxu0 0.0
    %195 = vmatpush1.msra.mxu0 %v141
    %196 = vmatprep.subr.mxu0 0.0
    %197 = vmatpush2.msra.mxu0 0.0
    %198 = vmatprep.subr.mxu0 0.0
    %199 = vmatpush2.msra.mxu0 0.0
    %200 = vmatprep.subr.mxu0 0.0
    %201 = vmatpush2.msra.mxu0 0.0
    %202 = vmatprep.subr.mxu0 0.0
    %203 = vmatpush2.msra.mxu0 0.0
    %204 = vmatprep.subr.mxu0 0.0
    %205 = vmatpush2.msra.mxu0 0.0
    %206 = vmatprep.subr.mxu0 0.0
    %207 = vmatpush2.msra.mxu0 0.0
    %208 = vmatprep.subr.mxu0 0.0
    %209 = vmatpush2.msra.mxu0 0.0
    %210 = vmatprep.subr.mxu0 0.0
    %211 = vmatpush2.msra.mxu0 0.0
    %212 = vmatprep.subr.mxu0 0.0
    %213 = vmatpush2.msra.mxu0 0.0
    %214 = vmatprep.subr.mxu0 0.0
    %215 = vmatpush2.msra.mxu0 0.0
    %216 = vmatprep.subr.mxu0 0.0
    %217 = vmatpush2.msra.mxu0 0.0
    %218 = vmatprep.subr.mxu0 0.0
    %219 = vmatpush2.msra.mxu0 0.0
    %220 = vmatprep.subr.mxu0 0.0
    %221 = vmatpush2.msra.mxu0 0.0
    %222 = vmatprep.subr.mxu0 0.0
    %223 = vmatpush2.msra.mxu0 0.0
    %224 = vmatprep.subr.mxu0 0.0
    %225 = vmatpush2.msra.mxu0 0.0
    %226 = vmatprep.subr.mxu0 0.0
    %227 = vmatpush2.msra.mxu0 0.0
    %228 = vmatprep.mubr.f32.mxu0 0.0
    %229 = vmatmul.mubr.f32.gmra.mxu0 %v162
    %v230 = vpop.f32.mrf.mxu0
    %v231 = vadd.f32 0.0, %v230
    %v232 = vpop.f32.mrf.mxu0
    %233 = vdwg.mxu0
    %v234 = vadd.f32 %v133, %v231
    %v235 = vxor.u32 %v234, 2147483648
    %v236 = vmul.f32 %v235, 1.442695
    %v237 = vpow.pop %v236
    %v238 = vadd.f32 %v237, 1.0
    %v239 = vrcp.pop %v238
    %v240 = vmul.f32 1.0, %v239
    %v241 = vtanh.pop %v234
    %v242 = vmul.f32 %v240, 0.0
    %244 = vrot.lane.b32.xlu0 %v241, 64
    %v245 = vpop.permute.xlu0 %244
    %v247 = vmul.f32 %v240, %v245
    %249 = vrot.lane.b32.xlu0 %v247, 32
    %v250 = vpop.permute.xlu0 %249
    %v252 = vadd.f32 %v242, %v250
    %v253 = vtanh.pop %v252
    %255 = vrot.lane.b32.xlu0 %v253, 64
    %v256 = vpop.permute.xlu0 %255
    %v258 = vmul.f32 %v240, %v256
    %260 = vrot.lane.b32.xlu0 %v258, 32
    %v261 = vpop.permute.xlu0 %260
    %v263 = vsel %vm160, %v261, 0.0
    %vm264 = vcmask 523264
    %v266 = vsel %vm264, %v263, 0
    %268 = vmatprep.subr.mxu0 0.0
    %269 = vmatpush1.msra.mxu0 0.0
    %270 = vmatprep.subr.mxu0 0.0
    %271 = vmatpush1.msra.mxu0 0.0
    %272 = vmatprep.subr.mxu0 0.0
    %273 = vmatpush1.msra.mxu0 0.0
    %274 = vmatprep.subr.mxu0 0.0
    %275 = vmatpush1.msra.mxu0 0.0
    %276 = vmatprep.subr.mxu0 0.0
    %277 = vmatpush1.msra.mxu0 0.0
    %278 = vmatprep.subr.mxu0 0.0
    %279 = vmatpush1.msra.mxu0 0.0
    %280 = vmatprep.subr.mxu0 0.0
    %281 = vmatpush1.msra.mxu0 0.0
    %282 = vmatprep.subr.mxu0 0.0
    %283 = vmatpush1.msra.mxu0 0.0
    %284 = vmatprep.subr.mxu0 0.0
    %285 = vmatpush1.msra.mxu0 %v152
    %286 = vmatprep.subr.mxu0 0.0
    %287 = vmatpush1.msra.mxu0 %v151
    %288 = vmatprep.subr.mxu0 0.0
    %289 = vmatpush1.msra.mxu0 %v150
    %290 = vmatprep.subr.mxu0 0.0
    %291 = vmatpush1.msra.mxu0 %v149
    %292 = vmatprep.subr.mxu0 0.0
    %293 = vmatpush1.msra.mxu0 %v148
    %294 = vmatprep.subr.mxu0 0.0
    %295 = vmatpush1.msra.mxu0 %v147
    %296 = vmatprep.subr.mxu0 0.0
    %297 = vmatpush1.msra.mxu0 %v146
    %298 = vmatprep.subr.mxu0 0.0
    %299 = vmatpush1.msra.mxu0 %v145
    %300 = vmatprep.subr.mxu0 0.0
    %301 = vmatpush2.msra.mxu0 0.0
    %302 = vmatprep.subr.mxu0 0.0
    %303 = vmatpush2.msra.mxu0 0.0
    %304 = vmatprep.subr.mxu0 0.0
    %305 = vmatpush2.msra.mxu0 0.0
    %306 = vmatprep.subr.mxu0 0.0
    %307 = vmatpush2.msra.mxu0 0.0
    %308 = vmatprep.subr.mxu0 0.0
    %309 = vmatpush2.msra.mxu0 0.0
    %310 = vmatprep.subr.mxu0 0.0
    %311 = vmatpush2.msra.mxu0 0.0
    %312 = vmatprep.subr.mxu0 0.0
    %313 = vmatpush2.msra.mxu0 0.0
    %314 = vmatprep.subr.mxu0 0.0
    %315 = vmatpush2.msra.mxu0 0.0
    %316 = vmatprep.subr.mxu0 0.0
    %317 = vmatpush2.msra.mxu0 0.0
    %318 = vmatprep.subr.mxu0 0.0
    %319 = vmatpush2.msra.mxu0 0.0
    %320 = vmatprep.subr.mxu0 0.0
    %321 = vmatpush2.msra.mxu0 0.0
    %322 = vmatprep.subr.mxu0 0.0
    %323 = vmatpush2.msra.mxu0 0.0
    %324 = vmatprep.subr.mxu0 0.0
    %325 = vmatpush2.msra.mxu0 0.0
    %326 = vmatprep.subr.mxu0 0.0
    %327 = vmatpush2.msra.mxu0 0.0
    %328 = vmatprep.subr.mxu0 0.0
    %329 = vmatpush2.msra.mxu0 0.0
    %330 = vmatprep.subr.mxu0 0.0
    %331 = vmatpush2.msra.mxu0 0.0
    %332 = vmatprep.mubr.f32.mxu0 0.0
    %333 = vmatmul.mubr.f32.gmra.mxu0 %v266
    %v334 = vpop.f32.mrf.mxu0
    %v335 = vadd.f32 %v158, %v334
    %v336 = vpop.f32.mrf.mxu0
    %337 = vdwg.mxu0
    %v338 = vxor.u32 %v335, 2147483648
    %v339 = vmul.f32 %v338, 1.442695
    %v340 = vpow.pop %v339
    %v341 = vadd.f32 %v340, 1.0
    %v342 = vrcp.pop %v341
    %v343 = vmul.f32 1.0, %v342
    %v344 = vtanh.pop %v335
    %v345 = vmul.f32 %v343, 0.0
    %347 = vrot.lane.b32.xlu0 %v344, 64
    %v348 = vpop.permute.xlu0 %347
    %v350 = vmul.f32 %v343, %v348
    %352 = vrot.lane.b32.xlu0 %v350, 32
    %v353 = vpop.permute.xlu0 %352
    %v355 = vadd.f32 %v345, %v353
    %v356 = vtanh.pop %v355
    %358 = vrot.lane.b32.xlu0 %v356, 64
    %v359 = vpop.permute.xlu0 %358
    %v361 = vmul.f32 %v343, %v359
    %363 = vrot.lane.b32.xlu0 %v361, 32
    %v364 = vpop.permute.xlu0 %363
    %vm366 = vcmask 254976
    %367 = vst.msk [vmem:[#allocation2] sm:$0x3] %vm366, %v364
    %v368 = vsel %vm160, %v261, 0
    %370 = vmatprep.subr.mxu0 0.0
    %371 = vmatpush1.msra.mxu0 0.0
    %372 = vmatprep.subr.mxu0 0.0
    %373 = vmatpush1.msra.mxu0 0.0
    %374 = vmatprep.subr.mxu0 0.0
    %375 = vmatpush1.msra.mxu0 0.0
    %376 = vmatprep.subr.mxu0 0.0
    %377 = vmatpush1.msra.mxu0 0.0
    %378 = vmatprep.subr.mxu0 0.0
    %379 = vmatpush1.msra.mxu0 0.0
    %380 = vmatprep.subr.mxu0 0.0
    %381 = vmatpush1.msra.mxu0 0.0
    %382 = vmatprep.subr.mxu0 0.0
    %383 = vmatpush1.msra.mxu0 0.0
    %384 = vmatprep.subr.mxu0 0.0
    %385 = vmatpush1.msra.mxu0 0.0
    %386 = vmatprep.subr.mxu0 0.0
    %387 = vmatpush1.msra.mxu0 0.0
    %388 = vmatprep.subr.mxu0 0.0
    %389 = vmatpush1.msra.mxu0 0.0
    %390 = vmatprep.subr.mxu0 0.0
    %391 = vmatpush1.msra.mxu0 0.0
    %392 = vmatprep.subr.mxu0 0.0
    %393 = vmatpush1.msra.mxu0 0.0
    %394 = vmatprep.subr.mxu0 0.0
    %395 = vmatpush1.msra.mxu0 %v144
    %396 = vmatprep.subr.mxu0 0.0
    %397 = vmatpush1.msra.mxu0 %v143
    %398 = vmatprep.subr.mxu0 0.0
    %399 = vmatpush1.msra.mxu0 %v142
    %400 = vmatprep.subr.mxu0 0.0
    %401 = vmatpush1.msra.mxu0 %v141
    %402 = vmatprep.subr.mxu0 0.0
    %403 = vmatpush2.msra.mxu0 0.0
    %404 = vmatprep.subr.mxu0 0.0
    %405 = vmatpush2.msra.mxu0 0.0
    %406 = vmatprep.subr.mxu0 0.0
    %407 = vmatpush2.msra.mxu0 0.0
    %408 = vmatprep.subr.mxu0 0.0
    %409 = vmatpush2.msra.mxu0 0.0
    %410 = vmatprep.subr.mxu0 0.0
    %411 = vmatpush2.msra.mxu0 0.0
    %412 = vmatprep.subr.mxu0 0.0
    %413 = vmatpush2.msra.mxu0 0.0
    %414 = vmatprep.subr.mxu0 0.0
    %415 = vmatpush2.msra.mxu0 0.0
    %416 = vmatprep.subr.mxu0 0.0
    %417 = vmatpush2.msra.mxu0 0.0
    %418 = vmatprep.subr.mxu0 0.0
    %419 = vmatpush2.msra.mxu0 0.0
    %420 = vmatprep.subr.mxu0 0.0
    %421 = vmatpush2.msra.mxu0 0.0
    %422 = vmatprep.subr.mxu0 0.0
    %423 = vmatpush2.msra.mxu0 0.0
    %424 = vmatprep.subr.mxu0 0.0
    %425 = vmatpush2.msra.mxu0 0.0
    %426 = vmatprep.subr.mxu0 0.0
    %427 = vmatpush2.msra.mxu0 0.0
    %428 = vmatprep.subr.mxu0 0.0
    %429 = vmatpush2.msra.mxu0 0.0
    %430 = vmatprep.subr.mxu0 0.0
    %431 = vmatpush2.msra.mxu0 0.0
    %432 = vmatprep.subr.mxu0 0.0
    %433 = vmatpush2.msra.mxu0 0.0
    %434 = vmatprep.mubr.f32.mxu0 0.0
    %435 = vmatmul.mubr.f32.gmra.mxu0 %v368
    %v436 = vpop.f32.mrf.mxu0
    %v437 = vadd.f32 0.0, %v436
    %v438 = vpop.f32.mrf.mxu0
    %439 = vdwg.mxu0
    %v441 = vrot.slane %v437, 6
    %v443 = vadd.f32 %v133, %v441
    %v444 = vxor.u32 %v443, 2147483648
    %v445 = vmul.f32 %v444, 1.442695
    %v446 = vpow.pop %v445
    %v447 = vadd.f32 %v446, 1.0
    %v448 = vrcp.pop %v447
    %v449 = vmul.f32 1.0, %v448
    %v450 = vtanh.pop %v443
    %v452 = vrot.slane %v252, 6
    %v454 = vmul.f32 %v449, %v452
    %456 = vrot.lane.b32.xlu0 %v450, 64
    %v457 = vpop.permute.xlu0 %456
    %v459 = vmul.f32 %v449, %v457
    %461 = vrot.lane.b32.xlu0 %v459, 32
    %v462 = vpop.permute.xlu0 %461
    %v464 = vadd.f32 %v454, %v462
    %v465 = vtanh.pop %v464
    %467 = vrot.lane.b32.xlu0 %v465, 64
    %v468 = vpop.permute.xlu0 %467
    %v470 = vmul.f32 %v449, %v468
    %472 = vrot.lane.b32.xlu0 %v470, 32
    %v473 = vpop.permute.xlu0 %472
    %v475 = vrot.slane %v361, 6
    %476 = vrot.lane.b32.xlu0 %v475, 64
    %v477 = vpop.permute.xlu0 %476
    %v479 = vsel %vm160, %v473, %v477
    %v481 = vrot.slane %v479, 2
    %v482 = vsel %vm264, %v481, 0
    %484 = vmatprep.subr.mxu0 0.0
    %485 = vmatpush1.msra.mxu0 0.0
    %486 = vmatprep.subr.mxu0 0.0
    %487 = vmatpush1.msra.mxu0 0.0
    %488 = vmatprep.subr.mxu0 0.0
    %489 = vmatpush1.msra.mxu0 0.0
    %490 = vmatprep.subr.mxu0 0.0
    %491 = vmatpush1.msra.mxu0 0.0
    %492 = vmatprep.subr.mxu0 0.0
    %493 = vmatpush1.msra.mxu0 0.0
    %494 = vmatprep.subr.mxu0 0.0
    %495 = vmatpush1.msra.mxu0 0.0
    %496 = vmatprep.subr.mxu0 0.0
    %497 = vmatpush1.msra.mxu0 0.0
    %498 = vmatprep.subr.mxu0 0.0
    %499 = vmatpush1.msra.mxu0 0.0
    %500 = vmatprep.subr.mxu0 0.0
    %501 = vmatpush1.msra.mxu0 %v152
    %502 = vmatprep.subr.mxu0 0.0
    %503 = vmatpush1.msra.mxu0 %v151
    %504 = vmatprep.subr.mxu0 0.0
    %505 = vmatpush1.msra.mxu0 %v150
    %506 = vmatprep.subr.mxu0 0.0
    %507 = vmatpush1.msra.mxu0 %v149
    %508 = vmatprep.subr.mxu0 0.0
    %509 = vmatpush1.msra.mxu0 %v148
    %510 = vmatprep.subr.mxu0 0.0
    %511 = vmatpush1.msra.mxu0 %v147
    %512 = vmatprep.subr.mxu0 0.0
    %513 = vmatpush1.msra.mxu0 %v146
    %514 = vmatprep.subr.mxu0 0.0
    %515 = vmatpush1.msra.mxu0 %v145
    %516 = vmatprep.subr.mxu0 0.0
    %517 = vmatpush2.msra.mxu0 0.0
    %518 = vmatprep.subr.mxu0 0.0
    %519 = vmatpush2.msra.mxu0 0.0
    %520 = vmatprep.subr.mxu0 0.0
    %521 = vmatpush2.msra.mxu0 0.0
    %522 = vmatprep.subr.mxu0 0.0
    %523 = vmatpush2.msra.mxu0 0.0
    %524 = vmatprep.subr.mxu0 0.0
    %525 = vmatpush2.msra.mxu0 0.0
    %526 = vmatprep.subr.mxu0 0.0
    %527 = vmatpush2.msra.mxu0 0.0
    %528 = vmatprep.subr.mxu0 0.0
    %529 = vmatpush2.msra.mxu0 0.0
    %530 = vmatprep.subr.mxu0 0.0
    %531 = vmatpush2.msra.mxu0 0.0
    %532 = vmatprep.subr.mxu0 0.0
    %533 = vmatpush2.msra.mxu0 0.0
    %534 = vmatprep.subr.mxu0 0.0
    %535 = vmatpush2.msra.mxu0 0.0
    %536 = vmatprep.subr.mxu0 0.0
    %537 = vmatpush2.msra.mxu0 0.0
    %538 = vmatprep.subr.mxu0 0.0
    %539 = vmatpush2.msra.mxu0 0.0
    %540 = vmatprep.subr.mxu0 0.0
    %541 = vmatpush2.msra.mxu0 0.0
    %542 = vmatprep.subr.mxu0 0.0
    %543 = vmatpush2.msra.mxu0 0.0
    %544 = vmatprep.subr.mxu0 0.0
    %545 = vmatpush2.msra.mxu0 0.0
    %546 = vmatprep.subr.mxu0 0.0
    %547 = vmatpush2.msra.mxu0 0.0
    %548 = vmatprep.mubr.f32.mxu0 0.0
    %549 = vmatmul.mubr.f32.gmra.mxu0 %v482
    %v550 = vpop.f32.mrf.mxu0
    %v551 = vadd.f32 %v158, %v550
    %v552 = vpop.f32.mrf.mxu0
    %553 = vdwg.mxu0
    %v554 = vxor.u32 %v551, 2147483648
    %v555 = vmul.f32 %v554, 1.442695
    %v556 = vpow.pop %v555
    %v557 = vadd.f32 %v556, 1.0
    %v558 = vrcp.pop %v557
    %v559 = vmul.f32 1.0, %v558
    %v560 = vtanh.pop %v551
    %v561 = vmul.f32 %v559, %v355
    %563 = vrot.lane.b32.xlu0 %v560, 64
    %v564 = vpop.permute.xlu0 %563
    %v566 = vmul.f32 %v559, %v564
    %568 = vrot.lane.b32.xlu0 %v566, 32
    %v569 = vpop.permute.xlu0 %568
    %v571 = vadd.f32 %v561, %v569
    %v572 = vtanh.pop %v571
    %574 = vrot.lane.b32.xlu0 %v572, 64
    %v575 = vpop.permute.xlu0 %574
    %v577 = vmul.f32 %v559, %v575
    %579 = vrot.lane.b32.xlu0 %v577, 32
    %v580 = vpop.permute.xlu0 %579
    %582 = vst.msk [vmem:[#allocation2 + $0x2] sm:$0x3] %vm366, %v580
    %v583 = vrot.slane %v470, 2
    %584 = vrot.lane.b32.xlu0 %v583, 32
    %v585 = vpop.permute.xlu0 %584
    %v586 = vsel %vm160, %v585, 0
    %588 = vmatprep.subr.mxu0 0.0
    %589 = vmatpush1.msra.mxu0 0.0
    %590 = vmatprep.subr.mxu0 0.0
    %591 = vmatpush1.msra.mxu0 0.0
    %592 = vmatprep.subr.mxu0 0.0
    %593 = vmatpush1.msra.mxu0 0.0
    %594 = vmatprep.subr.mxu0 0.0
    %595 = vmatpush1.msra.mxu0 0.0
    %596 = vmatprep.subr.mxu0 0.0
    %597 = vmatpush1.msra.mxu0 0.0
    %598 = vmatprep.subr.mxu0 0.0
    %599 = vmatpush1.msra.mxu0 0.0
    %600 = vmatprep.subr.mxu0 0.0
    %601 = vmatpush1.msra.mxu0 0.0
    %602 = vmatprep.subr.mxu0 0.0
    %603 = vmatpush1.msra.mxu0 0.0
    %604 = vmatprep.subr.mxu0 0.0
    %605 = vmatpush1.msra.mxu0 0.0
    %606 = vmatprep.subr.mxu0 0.0
    %607 = vmatpush1.msra.mxu0 0.0
    %608 = vmatprep.subr.mxu0 0.0
    %609 = vmatpush1.msra.mxu0 0.0
    %610 = vmatprep.subr.mxu0 0.0
    %611 = vmatpush1.msra.mxu0 0.0
    %612 = vmatprep.subr.mxu0 0.0
    %613 = vmatpush1.msra.mxu0 %v144
    %614 = vmatprep.subr.mxu0 0.0
    %615 = vmatpush1.msra.mxu0 %v143
    %616 = vmatprep.subr.mxu0 0.0
    %617 = vmatpush1.msra.mxu0 %v142
    %618 = vmatprep.subr.mxu0 0.0
    %619 = vmatpush1.msra.mxu0 %v141
    %620 = vmatprep.subr.mxu0 0.0
    %621 = vmatpush2.msra.mxu0 0.0
    %622 = vmatprep.subr.mxu0 0.0
    %623 = vmatpush2.msra.mxu0 0.0
    %624 = vmatprep.subr.mxu0 0.0
    %625 = vmatpush2.msra.mxu0 0.0
    %626 = vmatprep.subr.mxu0 0.0
    %627 = vmatpush2.msra.mxu0 0.0
    %628 = vmatprep.subr.mxu0 0.0
    %629 = vmatpush2.msra.mxu0 0.0
    %630 = vmatprep.subr.mxu0 0.0
    %631 = vmatpush2.msra.mxu0 0.0
    %632 = vmatprep.subr.mxu0 0.0
    %633 = vmatpush2.msra.mxu0 0.0
    %634 = vmatprep.subr.mxu0 0.0
    %635 = vmatpush2.msra.mxu0 0.0
    %636 = vmatprep.subr.mxu0 0.0
    %637 = vmatpush2.msra.mxu0 0.0
    %638 = vmatprep.subr.mxu0 0.0
    %639 = vmatpush2.msra.mxu0 0.0
    %640 = vmatprep.subr.mxu0 0.0
    %641 = vmatpush2.msra.mxu0 0.0
    %642 = vmatprep.subr.mxu0 0.0
    %643 = vmatpush2.msra.mxu0 0.0
    %644 = vmatprep.subr.mxu0 0.0
    %645 = vmatpush2.msra.mxu0 0.0
    %646 = vmatprep.subr.mxu0 0.0
    %647 = vmatpush2.msra.mxu0 0.0
    %648 = vmatprep.subr.mxu0 0.0
    %649 = vmatpush2.msra.mxu0 0.0
    %650 = vmatprep.subr.mxu0 0.0
    %651 = vmatpush2.msra.mxu0 0.0
    %652 = vmatprep.mubr.f32.mxu0 0.0
    %653 = vmatmul.mubr.f32.gmra.mxu0 %v586
    %v654 = vpop.f32.mrf.mxu0
    %v655 = vadd.f32 0.0, %v654
    %v656 = vpop.f32.mrf.mxu0
    %657 = vdwg.mxu0
    %v659 = vrot.slane %v655, 4
    %v661 = vadd.f32 %v133, %v659
    %v662 = vxor.u32 %v661, 2147483648
    %v663 = vmul.f32 %v662, 1.442695
    %v664 = vpow.pop %v663
    %v665 = vadd.f32 %v664, 1.0
    %v666 = vrcp.pop %v665
    %v667 = vmul.f32 1.0, %v666
    %v668 = vtanh.pop %v661
    %v670 = vrot.slane %v464, 6
    %v672 = vmul.f32 %v667, %v670
    %674 = vrot.lane.b32.xlu0 %v668, 64
    %v675 = vpop.permute.xlu0 %674
    %v677 = vmul.f32 %v667, %v675
    %679 = vrot.lane.b32.xlu0 %v677, 32
    %v680 = vpop.permute.xlu0 %679
    %v682 = vadd.f32 %v672, %v680
    %v683 = vtanh.pop %v682
    %685 = vrot.lane.b32.xlu0 %v683, 64
    %v686 = vpop.permute.xlu0 %685
    %v688 = vmul.f32 %v667, %v686
    %690 = vrot.lane.b32.xlu0 %v688, 32
    %v691 = vpop.permute.xlu0 %690
    %v693 = vrot.slane %v577, 4
    %694 = vrot.lane.b32.xlu0 %v693, 64
    %v695 = vpop.permute.xlu0 %694
    %v697 = vsel %vm160, %v691, %v695
    %v699 = vrot.slane %v697, 4
    %v700 = vsel %vm264, %v699, 0
    %702 = vmatprep.subr.mxu0 0.0
    %703 = vmatpush1.msra.mxu0 0.0
    %704 = vmatprep.subr.mxu0 0.0
    %705 = vmatpush1.msra.mxu0 0.0
    %706 = vmatprep.subr.mxu0 0.0
    %707 = vmatpush1.msra.mxu0 0.0
    %708 = vmatprep.subr.mxu0 0.0
    %709 = vmatpush1.msra.mxu0 0.0
    %710 = vmatprep.subr.mxu0 0.0
    %711 = vmatpush1.msra.mxu0 0.0
    %712 = vmatprep.subr.mxu0 0.0
    %713 = vmatpush1.msra.mxu0 0.0
    %714 = vmatprep.subr.mxu0 0.0
    %715 = vmatpush1.msra.mxu0 0.0
    %716 = vmatprep.subr.mxu0 0.0
    %717 = vmatpush1.msra.mxu0 0.0
    %718 = vmatprep.subr.mxu0 0.0
    %719 = vmatpush1.msra.mxu0 %v152
    %720 = vmatprep.subr.mxu0 0.0
    %721 = vmatpush1.msra.mxu0 %v151
    %722 = vmatprep.subr.mxu0 0.0
    %723 = vmatpush1.msra.mxu0 %v150
    %724 = vmatprep.subr.mxu0 0.0
    %725 = vmatpush1.msra.mxu0 %v149
    %726 = vmatprep.subr.mxu0 0.0
    %727 = vmatpush1.msra.mxu0 %v148
    %728 = vmatprep.subr.mxu0 0.0
    %729 = vmatpush1.msra.mxu0 %v147
    %730 = vmatprep.subr.mxu0 0.0
    %731 = vmatpush1.msra.mxu0 %v146
    %732 = vmatprep.subr.mxu0 0.0
    %733 = vmatpush1.msra.mxu0 %v145
    %734 = vmatprep.subr.mxu0 0.0
    %735 = vmatpush2.msra.mxu0 0.0
    %736 = vmatprep.subr.mxu0 0.0
    %737 = vmatpush2.msra.mxu0 0.0
    %738 = vmatprep.subr.mxu0 0.0
    %739 = vmatpush2.msra.mxu0 0.0
    %740 = vmatprep.subr.mxu0 0.0
    %741 = vmatpush2.msra.mxu0 0.0
    %742 = vmatprep.subr.mxu0 0.0
    %743 = vmatpush2.msra.mxu0 0.0
    %744 = vmatprep.subr.mxu0 0.0
    %745 = vmatpush2.msra.mxu0 0.0
    %746 = vmatprep.subr.mxu0 0.0
    %747 = vmatpush2.msra.mxu0 0.0
    %748 = vmatprep.subr.mxu0 0.0
    %749 = vmatpush2.msra.mxu0 0.0
    %750 = vmatprep.subr.mxu0 0.0
    %751 = vmatpush2.msra.mxu0 0.0
    %752 = vmatprep.subr.mxu0 0.0
    %753 = vmatpush2.msra.mxu0 0.0
    %754 = vmatprep.subr.mxu0 0.0
    %755 = vmatpush2.msra.mxu0 0.0
    %756 = vmatprep.subr.mxu0 0.0
    %757 = vmatpush2.msra.mxu0 0.0
    %758 = vmatprep.subr.mxu0 0.0
    %759 = vmatpush2.msra.mxu0 0.0
    %760 = vmatprep.subr.mxu0 0.0
    %761 = vmatpush2.msra.mxu0 0.0
    %762 = vmatprep.subr.mxu0 0.0
    %763 = vmatpush2.msra.mxu0 0.0
    %764 = vmatprep.subr.mxu0 0.0
    %765 = vmatpush2.msra.mxu0 0.0
    %766 = vmatprep.mubr.f32.mxu0 0.0
    %767 = vmatmul.mubr.f32.gmra.mxu0 %v700
    %v768 = vpop.f32.mrf.mxu0
    %v769 = vadd.f32 %v158, %v768
    %v770 = vpop.f32.mrf.mxu0
    %771 = vdwg.mxu0
    %v772 = vxor.u32 %v769, 2147483648
    %v773 = vmul.f32 %v772, 1.442695
    %v774 = vpow.pop %v773
    %v775 = vadd.f32 %v774, 1.0
    %v776 = vrcp.pop %v775
    %v777 = vmul.f32 1.0, %v776
    %v778 = vtanh.pop %v769
    %v779 = vmul.f32 %v777, %v571
    %781 = vrot.lane.b32.xlu0 %v778, 64
    %v782 = vpop.permute.xlu0 %781
    %v784 = vmul.f32 %v777, %v782
    %786 = vrot.lane.b32.xlu0 %v784, 32
    %v787 = vpop.permute.xlu0 %786
    %v789 = vadd.f32 %v779, %v787
    %v790 = vtanh.pop %v789
    %792 = vrot.lane.b32.xlu0 %v790, 64
    %v793 = vpop.permute.xlu0 %792
    %v795 = vmul.f32 %v777, %v793
    %797 = vrot.lane.b32.xlu0 %v795, 32
    %v798 = vpop.permute.xlu0 %797
    %800 = vst.msk [vmem:[#allocation2 + $0x4] sm:$0x3] %vm366, %v798
    %v801 = vrot.slane %v688, 4
    %802 = vrot.lane.b32.xlu0 %v801, 32
    %v803 = vpop.permute.xlu0 %802
    %v804 = vsel %vm160, %v803, 0
    %806 = vmatprep.subr.mxu0 0.0
    %807 = vmatpush1.msra.mxu0 0.0
    %808 = vmatprep.subr.mxu0 0.0
    %809 = vmatpush1.msra.mxu0 0.0
    %810 = vmatprep.subr.mxu0 0.0
    %811 = vmatpush1.msra.mxu0 0.0
    %812 = vmatprep.subr.mxu0 0.0
    %813 = vmatpush1.msra.mxu0 0.0
    %814 = vmatprep.subr.mxu0 0.0
    %815 = vmatpush1.msra.mxu0 0.0
    %816 = vmatprep.subr.mxu0 0.0
    %817 = vmatpush1.msra.mxu0 0.0
    %818 = vmatprep.subr.mxu0 0.0
    %819 = vmatpush1.msra.mxu0 0.0
    %820 = vmatprep.subr.mxu0 0.0
    %821 = vmatpush1.msra.mxu0 0.0
    %822 = vmatprep.subr.mxu0 0.0
    %823 = vmatpush1.msra.mxu0 0.0
    %824 = vmatprep.subr.mxu0 0.0
    %825 = vmatpush1.msra.mxu0 0.0
    %826 = vmatprep.subr.mxu0 0.0
    %827 = vmatpush1.msra.mxu0 0.0
    %828 = vmatprep.subr.mxu0 0.0
    %829 = vmatpush1.msra.mxu0 0.0
    %830 = vmatprep.subr.mxu0 0.0
    %831 = vmatpush1.msra.mxu0 %v144
    %832 = vmatprep.subr.mxu0 0.0
    %833 = vmatpush1.msra.mxu0 %v143
    %834 = vmatprep.subr.mxu0 0.0
    %835 = vmatpush1.msra.mxu0 %v142
    %836 = vmatprep.subr.mxu0 0.0
    %837 = vmatpush1.msra.mxu0 %v141
    %838 = vmatprep.subr.mxu0 0.0
    %839 = vmatpush2.msra.mxu0 0.0
    %840 = vmatprep.subr.mxu0 0.0
    %841 = vmatpush2.msra.mxu0 0.0
    %842 = vmatprep.subr.mxu0 0.0
    %843 = vmatpush2.msra.mxu0 0.0
    %844 = vmatprep.subr.mxu0 0.0
    %845 = vmatpush2.msra.mxu0 0.0
    %846 = vmatprep.subr.mxu0 0.0
    %847 = vmatpush2.msra.mxu0 0.0
    %848 = vmatprep.subr.mxu0 0.0
    %849 = vmatpush2.msra.mxu0 0.0
    %850 = vmatprep.subr.mxu0 0.0
    %851 = vmatpush2.msra.mxu0 0.0
    %852 = vmatprep.subr.mxu0 0.0
    %853 = vmatpush2.msra.mxu0 0.0
    %854 = vmatprep.subr.mxu0 0.0
    %855 = vmatpush2.msra.mxu0 0.0
    %856 = vmatprep.subr.mxu0 0.0
    %857 = vmatpush2.msra.mxu0 0.0
    %858 = vmatprep.subr.mxu0 0.0
    %859 = vmatpush2.msra.mxu0 0.0
    %860 = vmatprep.subr.mxu0 0.0
    %861 = vmatpush2.msra.mxu0 0.0
    %862 = vmatprep.subr.mxu0 0.0
    %863 = vmatpush2.msra.mxu0 0.0
    %864 = vmatprep.subr.mxu0 0.0
    %865 = vmatpush2.msra.mxu0 0.0
    %866 = vmatprep.subr.mxu0 0.0
    %867 = vmatpush2.msra.mxu0 0.0
    %868 = vmatprep.subr.mxu0 0.0
    %869 = vmatpush2.msra.mxu0 0.0
    %870 = vmatprep.mubr.f32.mxu0 0.0
    %871 = vmatmul.mubr.f32.gmra.mxu0 %v804
    %v872 = vpop.f32.mrf.mxu0
    %v873 = vadd.f32 0.0, %v872
    %v874 = vpop.f32.mrf.mxu0
    %875 = vdwg.mxu0
    %v877 = vrot.slane %v873, 2
    %v879 = vadd.f32 %v133, %v877
    %v880 = vxor.u32 %v879, 2147483648
    %v881 = vmul.f32 %v880, 1.442695
    %v882 = vpow.pop %v881
    %v883 = vadd.f32 %v882, 1.0
    %v884 = vrcp.pop %v883
    %v885 = vmul.f32 1.0, %v884
    %v886 = vtanh.pop %v879
    %v888 = vrot.slane %v682, 6
    %v890 = vmul.f32 %v885, %v888
    %892 = vrot.lane.b32.xlu0 %v886, 64
    %v893 = vpop.permute.xlu0 %892
    %v895 = vmul.f32 %v885, %v893
    %897 = vrot.lane.b32.xlu0 %v895, 32
    %v898 = vpop.permute.xlu0 %897
    %v900 = vadd.f32 %v890, %v898
    %v901 = vtanh.pop %v900
    %903 = vrot.lane.b32.xlu0 %v901, 64
    %v904 = vpop.permute.xlu0 %903
    %v906 = vmul.f32 %v885, %v904
    %908 = vrot.lane.b32.xlu0 %v906, 32
    %v909 = vpop.permute.xlu0 %908
    %v911 = vrot.slane %v795, 2
    %912 = vrot.lane.b32.xlu0 %v911, 64
    %v913 = vpop.permute.xlu0 %912
    %v915 = vsel %vm160, %v909, %v913
    %v917 = vrot.slane %v915, 6
    %v918 = vsel %vm264, %v917, 0
    %920 = vmatprep.subr.mxu0 0.0
    %921 = vmatpush1.msra.mxu0 0.0
    %922 = vmatprep.subr.mxu0 0.0
    %923 = vmatpush1.msra.mxu0 0.0
    %924 = vmatprep.subr.mxu0 0.0
    %925 = vmatpush1.msra.mxu0 0.0
    %926 = vmatprep.subr.mxu0 0.0
    %927 = vmatpush1.msra.mxu0 0.0
    %928 = vmatprep.subr.mxu0 0.0
    %929 = vmatpush1.msra.mxu0 0.0
    %930 = vmatprep.subr.mxu0 0.0
    %931 = vmatpush1.msra.mxu0 0.0
    %932 = vmatprep.subr.mxu0 0.0
    %933 = vmatpush1.msra.mxu0 0.0
    %934 = vmatprep.subr.mxu0 0.0
    %935 = vmatpush1.msra.mxu0 0.0
    %936 = vmatprep.subr.mxu0 0.0
    %937 = vmatpush1.msra.mxu0 %v152
    %938 = vmatprep.subr.mxu0 0.0
    %939 = vmatpush1.msra.mxu0 %v151
    %940 = vmatprep.subr.mxu0 0.0
    %941 = vmatpush1.msra.mxu0 %v150
    %942 = vmatprep.subr.mxu0 0.0
    %943 = vmatpush1.msra.mxu0 %v149
    %944 = vmatprep.subr.mxu0 0.0
    %945 = vmatpush1.msra.mxu0 %v148
    %946 = vmatprep.subr.mxu0 0.0
    %947 = vmatpush1.msra.mxu0 %v147
    %948 = vmatprep.subr.mxu0 0.0
    %949 = vmatpush1.msra.mxu0 %v146
    %950 = vmatprep.subr.mxu0 0.0
    %951 = vmatpush1.msra.mxu0 %v145
    %952 = vmatprep.subr.mxu0 0.0
    %953 = vmatpush2.msra.mxu0 0.0
    %954 = vmatprep.subr.mxu0 0.0
    %955 = vmatpush2.msra.mxu0 0.0
    %956 = vmatprep.subr.mxu0 0.0
    %957 = vmatpush2.msra.mxu0 0.0
    %958 = vmatprep.subr.mxu0 0.0
    %959 = vmatpush2.msra.mxu0 0.0
    %960 = vmatprep.subr.mxu0 0.0
    %961 = vmatpush2.msra.mxu0 0.0
    %962 = vmatprep.subr.mxu0 0.0
    %963 = vmatpush2.msra.mxu0 0.0
    %964 = vmatprep.subr.mxu0 0.0
    %965 = vmatpush2.msra.mxu0 0.0
    %966 = vmatprep.subr.mxu0 0.0
    %967 = vmatpush2.msra.mxu0 0.0
    %968 = vmatprep.subr.mxu0 0.0
    %969 = vmatpush2.msra.mxu0 0.0
    %970 = vmatprep.subr.mxu0 0.0
    %971 = vmatpush2.msra.mxu0 0.0
    %972 = vmatprep.subr.mxu0 0.0
    %973 = vmatpush2.msra.mxu0 0.0
    %974 = vmatprep.subr.mxu0 0.0
    %975 = vmatpush2.msra.mxu0 0.0
    %976 = vmatprep.subr.mxu0 0.0
    %977 = vmatpush2.msra.mxu0 0.0
    %978 = vmatprep.subr.mxu0 0.0
    %979 = vmatpush2.msra.mxu0 0.0
    %980 = vmatprep.subr.mxu0 0.0
    %981 = vmatpush2.msra.mxu0 0.0
    %982 = vmatprep.subr.mxu0 0.0
    %983 = vmatpush2.msra.mxu0 0.0
    %984 = vmatprep.mubr.f32.mxu0 0.0
    %985 = vmatmul.mubr.f32.gmra.mxu0 %v918
    %v986 = vpop.f32.mrf.mxu0
    %v987 = vadd.f32 %v158, %v986
    %v988 = vpop.f32.mrf.mxu0
    %989 = vdwg.mxu0
    %v990 = vxor.u32 %v987, 2147483648
    %v991 = vmul.f32 %v990, 1.442695
    %v992 = vpow.pop %v991
    %v993 = vadd.f32 %v992, 1.0
    %v994 = vrcp.pop %v993
    %v995 = vmul.f32 1.0, %v994
    %v996 = vtanh.pop %v987
    %v997 = vmul.f32 %v995, %v789
    %999 = vrot.lane.b32.xlu0 %v996, 64
    %v1000 = vpop.permute.xlu0 %999
    %v1002 = vmul.f32 %v995, %v1000
    %1004 = vrot.lane.b32.xlu0 %v1002, 32
    %v1005 = vpop.permute.xlu0 %1004
    %v1007 = vadd.f32 %v997, %v1005
    %v1008 = vtanh.pop %v1007
    %1010 = vrot.lane.b32.xlu0 %v1008, 64
    %v1011 = vpop.permute.xlu0 %1010
    %v1013 = vmul.f32 %v995, %v1011
    %1015 = vrot.lane.b32.xlu0 %v1013, 32
    %v1016 = vpop.permute.xlu0 %1015
    %1018 = vst.msk [vmem:[#allocation2 + $0x6] sm:$0x3] %vm366, %v1016
    %v1019 = vrot.slane %v906, 6
    %1020 = vrot.lane.b32.xlu0 %v1019, 32
    %v1021 = vpop.permute.xlu0 %1020
    %v1022 = vsel %vm160, %v1021, 0
    %1024 = vmatprep.subr.mxu0 0.0
    %1025 = vmatpush1.msra.mxu0 0.0
    %1026 = vmatprep.subr.mxu0 0.0
    %1027 = vmatpush1.msra.mxu0 0.0
    %1028 = vmatprep.subr.mxu0 0.0
    %1029 = vmatpush1.msra.mxu0 0.0
    %1030 = vmatprep.subr.mxu0 0.0
    %1031 = vmatpush1.msra.mxu0 0.0
    %1032 = vmatprep.subr.mxu0 0.0
    %1033 = vmatpush1.msra.mxu0 0.0
    %1034 = vmatprep.subr.mxu0 0.0
    %1035 = vmatpush1.msra.mxu0 0.0
    %1036 = vmatprep.subr.mxu0 0.0
    %1037 = vmatpush1.msra.mxu0 0.0
    %1038 = vmatprep.subr.mxu0 0.0
    %1039 = vmatpush1.msra.mxu0 0.0
    %1040 = vmatprep.subr.mxu0 0.0
    %1041 = vmatpush1.msra.mxu0 0.0
    %1042 = vmatprep.subr.mxu0 0.0
    %1043 = vmatpush1.msra.mxu0 0.0
    %1044 = vmatprep.subr.mxu0 0.0
    %1045 = vmatpush1.msra.mxu0 0.0
    %1046 = vmatprep.subr.mxu0 0.0
    %1047 = vmatpush1.msra.mxu0 0.0
    %1048 = vmatprep.subr.mxu0 0.0
    %1049 = vmatpush1.msra.mxu0 %v144
    %1050 = vmatprep.subr.mxu0 0.0
    %1051 = vmatpush1.msra.mxu0 %v143
    %1052 = vmatprep.subr.mxu0 0.0
    %1053 = vmatpush1.msra.mxu0 %v142
    %1054 = vmatprep.subr.mxu0 0.0
    %1055 = vmatpush1.msra.mxu0 %v141
    %1056 = vmatprep.subr.mxu0 0.0
    %1057 = vmatpush2.msra.mxu0 0.0
    %1058 = vmatprep.subr.mxu0 0.0
    %1059 = vmatpush2.msra.mxu0 0.0
    %1060 = vmatprep.subr.mxu0 0.0
    %1061 = vmatpush2.msra.mxu0 0.0
    %1062 = vmatprep.subr.mxu0 0.0
    %1063 = vmatpush2.msra.mxu0 0.0
    %1064 = vmatprep.subr.mxu0 0.0
    %1065 = vmatpush2.msra.mxu0 0.0
    %1066 = vmatprep.subr.mxu0 0.0
    %1067 = vmatpush2.msra.mxu0 0.0
    %1068 = vmatprep.subr.mxu0 0.0
    %1069 = vmatpush2.msra.mxu0 0.0
    %1070 = vmatprep.subr.mxu0 0.0
    %1071 = vmatpush2.msra.mxu0 0.0
    %1072 = vmatprep.subr.mxu0 0.0
    %1073 = vmatpush2.msra.mxu0 0.0
    %1074 = vmatprep.subr.mxu0 0.0
    %1075 = vmatpush2.msra.mxu0 0.0
    %1076 = vmatprep.subr.mxu0 0.0
    %1077 = vmatpush2.msra.mxu0 0.0
    %1078 = vmatprep.subr.mxu0 0.0
    %1079 = vmatpush2.msra.mxu0 0.0
    %1080 = vmatprep.subr.mxu0 0.0
    %1081 = vmatpush2.msra.mxu0 0.0
    %1082 = vmatprep.subr.mxu0 0.0
    %1083 = vmatpush2.msra.mxu0 0.0
    %1084 = vmatprep.subr.mxu0 0.0
    %1085 = vmatpush2.msra.mxu0 0.0
    %1086 = vmatprep.subr.mxu0 0.0
    %1087 = vmatpush2.msra.mxu0 0.0
    %1088 = vmatprep.mubr.f32.mxu0 0.0
    %1089 = vmatmul.mubr.f32.gmra.mxu0 %v1022
    %v1090 = vpop.f32.mrf.mxu0
    %v1091 = vadd.f32 0.0, %v1090
    %v1092 = vpop.f32.mrf.mxu0
    %1093 = vdwg.mxu0
    %v1094 = vadd.f32 %v138, %v1091
    %v1095 = vxor.u32 %v1094, 2147483648
    %v1096 = vmul.f32 %v1095, 1.442695
    %v1097 = vpow.pop %v1096
    %v1098 = vadd.f32 %v1097, 1.0
    %v1099 = vrcp.pop %v1098
    %v1100 = vmul.f32 1.0, %v1099
    %v1101 = vtanh.pop %v1094
    %v1103 = vrot.slane %v900, 6
    %v1105 = vmul.f32 %v1100, %v1103
    %1107 = vrot.lane.b32.xlu0 %v1101, 64
    %v1108 = vpop.permute.xlu0 %1107
    %v1110 = vmul.f32 %v1100, %v1108
    %1112 = vrot.lane.b32.xlu0 %v1110, 32
    %v1113 = vpop.permute.xlu0 %1112
    %v1115 = vadd.f32 %v1105, %v1113
    %v1116 = vtanh.pop %v1115
    %1118 = vrot.lane.b32.xlu0 %v1116, 64
    %v1119 = vpop.permute.xlu0 %1118
    %v1121 = vmul.f32 %v1100, %v1119
    %1123 = vrot.lane.b32.xlu0 %v1121, 32
    %v1124 = vpop.permute.xlu0 %1123
    %1126 = vrot.lane.b32.xlu0 %v1013, 64
    %v1127 = vpop.permute.xlu0 %1126
    %v1129 = vsel %vm160, %v1124, %v1127
    %v1131 = vsel %vm264, %v1129, 0
    %1133 = vmatprep.subr.mxu0 0.0
    %1134 = vmatpush1.msra.mxu0 0.0
    %1135 = vmatprep.subr.mxu0 0.0
    %1136 = vmatpush1.msra.mxu0 0.0
    %1137 = vmatprep.subr.mxu0 0.0
    %1138 = vmatpush1.msra.mxu0 0.0
    %1139 = vmatprep.subr.mxu0 0.0
    %1140 = vmatpush1.msra.mxu0 0.0
    %1141 = vmatprep.subr.mxu0 0.0
    %1142 = vmatpush1.msra.mxu0 0.0
    %1143 = vmatprep.subr.mxu0 0.0
    %1144 = vmatpush1.msra.mxu0 0.0
    %1145 = vmatprep.subr.mxu0 0.0
    %1146 = vmatpush1.msra.mxu0 0.0
    %1147 = vmatprep.subr.mxu0 0.0
    %1148 = vmatpush1.msra.mxu0 0.0
    %1149 = vmatprep.subr.mxu0 0.0
    %1150 = vmatpush1.msra.mxu0 %v152
    %1151 = vmatprep.subr.mxu0 0.0
    %1152 = vmatpush1.msra.mxu0 %v151
    %1153 = vmatprep.subr.mxu0 0.0
    %1154 = vmatpush1.msra.mxu0 %v150
    %1155 = vmatprep.subr.mxu0 0.0
    %1156 = vmatpush1.msra.mxu0 %v149
    %1157 = vmatprep.subr.mxu0 0.0
    %1158 = vmatpush1.msra.mxu0 %v148
    %1159 = vmatprep.subr.mxu0 0.0
    %1160 = vmatpush1.msra.mxu0 %v147
    %1161 = vmatprep.subr.mxu0 0.0
    %1162 = vmatpush1.msra.mxu0 %v146
    %1163 = vmatprep.subr.mxu0 0.0
    %1164 = vmatpush1.msra.mxu0 %v145
    %1165 = vmatprep.subr.mxu0 0.0
    %1166 = vmatpush2.msra.mxu0 0.0
    %1167 = vmatprep.subr.mxu0 0.0
    %1168 = vmatpush2.msra.mxu0 0.0
    %1169 = vmatprep.subr.mxu0 0.0
    %1170 = vmatpush2.msra.mxu0 0.0
    %1171 = vmatprep.subr.mxu0 0.0
    %1172 = vmatpush2.msra.mxu0 0.0
    %1173 = vmatprep.subr.mxu0 0.0
    %1174 = vmatpush2.msra.mxu0 0.0
    %1175 = vmatprep.subr.mxu0 0.0
    %1176 = vmatpush2.msra.mxu0 0.0
    %1177 = vmatprep.subr.mxu0 0.0
    %1178 = vmatpush2.msra.mxu0 0.0
    %1179 = vmatprep.subr.mxu0 0.0
    %1180 = vmatpush2.msra.mxu0 0.0
    %1181 = vmatprep.subr.mxu0 0.0
    %1182 = vmatpush2.msra.mxu0 0.0
    %1183 = vmatprep.subr.mxu0 0.0
    %1184 = vmatpush2.msra.mxu0 0.0
    %1185 = vmatprep.subr.mxu0 0.0
    %1186 = vmatpush2.msra.mxu0 0.0
    %1187 = vmatprep.subr.mxu0 0.0
    %1188 = vmatpush2.msra.mxu0 0.0
    %1189 = vmatprep.subr.mxu0 0.0
    %1190 = vmatpush2.msra.mxu0 0.0
    %1191 = vmatprep.subr.mxu0 0.0
    %1192 = vmatpush2.msra.mxu0 0.0
    %1193 = vmatprep.subr.mxu0 0.0
    %1194 = vmatpush2.msra.mxu0 0.0
    %1195 = vmatprep.subr.mxu0 0.0
    %1196 = vmatpush2.msra.mxu0 0.0
    %1197 = vmatprep.mubr.f32.mxu0 0.0
    %1198 = vmatmul.mubr.f32.gmra.mxu0 %v1131
    %v1199 = vpop.f32.mrf.mxu0
    %v1200 = vadd.f32 %v158, %v1199
    %v1201 = vpop.f32.mrf.mxu0
    %1202 = vdwg.mxu0
    %v1203 = vxor.u32 %v1200, 2147483648
    %v1204 = vmul.f32 %v1203, 1.442695
    %v1205 = vpow.pop %v1204
    %v1206 = vadd.f32 %v1205, 1.0
    %v1207 = vrcp.pop %v1206
    %v1208 = vmul.f32 1.0, %v1207
    %v1209 = vtanh.pop %v1200
    %v1210 = vmul.f32 %v1208, %v1007
    %1212 = vrot.lane.b32.xlu0 %v1209, 64
    %v1213 = vpop.permute.xlu0 %1212
    %v1215 = vmul.f32 %v1208, %v1213
    %1217 = vrot.lane.b32.xlu0 %v1215, 32
    %v1218 = vpop.permute.xlu0 %1217
    %v1220 = vadd.f32 %v1210, %v1218
    %v1221 = vtanh.pop %v1220
    %1223 = vrot.lane.b32.xlu0 %v1221, 64
    %v1224 = vpop.permute.xlu0 %1223
    %v1226 = vmul.f32 %v1208, %v1224
    %1228 = vrot.lane.b32.xlu0 %v1226, 32
    %v1229 = vpop.permute.xlu0 %1228
    %1231 = vst.msk [vmem:[#allocation2 + $0x8] sm:$0x3] %vm366, %v1229
    %v1232 = vsel %vm160, %v1124, 0
    %1234 = vmatprep.subr.mxu0 0.0
    %1235 = vmatpush1.msra.mxu0 0.0
    %1236 = vmatprep.subr.mxu0 0.0
    %1237 = vmatpush1.msra.mxu0 0.0
    %1238 = vmatprep.subr.mxu0 0.0
    %1239 = vmatpush1.msra.mxu0 0.0
    %1240 = vmatprep.subr.mxu0 0.0
    %1241 = vmatpush1.msra.mxu0 0.0
    %1242 = vmatprep.subr.mxu0 0.0
    %1243 = vmatpush1.msra.mxu0 0.0
    %1244 = vmatprep.subr.mxu0 0.0
    %1245 = vmatpush1.msra.mxu0 0.0
    %1246 = vmatprep.subr.mxu0 0.0
    %1247 = vmatpush1.msra.mxu0 0.0
    %1248 = vmatprep.subr.mxu0 0.0
    %1249 = vmatpush1.msra.mxu0 0.0
    %1250 = vmatprep.subr.mxu0 0.0
    %1251 = vmatpush1.msra.mxu0 0.0
    %1252 = vmatprep.subr.mxu0 0.0
    %1253 = vmatpush1.msra.mxu0 0.0
    %1254 = vmatprep.subr.mxu0 0.0
    %1255 = vmatpush1.msra.mxu0 0.0
    %1256 = vmatprep.subr.mxu0 0.0
    %1257 = vmatpush1.msra.mxu0 0.0
    %1258 = vmatprep.subr.mxu0 0.0
    %1259 = vmatpush1.msra.mxu0 %v144
    %1260 = vmatprep.subr.mxu0 0.0
    %1261 = vmatpush1.msra.mxu0 %v143
    %1262 = vmatprep.subr.mxu0 0.0
    %1263 = vmatpush1.msra.mxu0 %v142
    %1264 = vmatprep.subr.mxu0 0.0
    %1265 = vmatpush1.msra.mxu0 %v141
    %1266 = vmatprep.subr.mxu0 0.0
    %1267 = vmatpush2.msra.mxu0 0.0
    %1268 = vmatprep.subr.mxu0 0.0
    %1269 = vmatpush2.msra.mxu0 0.0
    %1270 = vmatprep.subr.mxu0 0.0
    %1271 = vmatpush2.msra.mxu0 0.0
    %1272 = vmatprep.subr.mxu0 0.0
    %1273 = vmatpush2.msra.mxu0 0.0
    %1274 = vmatprep.subr.mxu0 0.0
    %1275 = vmatpush2.msra.mxu0 0.0
    %1276 = vmatprep.subr.mxu0 0.0
    %1277 = vmatpush2.msra.mxu0 0.0
    %1278 = vmatprep.subr.mxu0 0.0
    %1279 = vmatpush2.msra.mxu0 0.0
    %1280 = vmatprep.subr.mxu0 0.0
    %1281 = vmatpush2.msra.mxu0 0.0
    %1282 = vmatprep.subr.mxu0 0.0
    %1283 = vmatpush2.msra.mxu0 0.0
    %1284 = vmatprep.subr.mxu0 0.0
    %1285 = vmatpush2.msra.mxu0 0.0
    %1286 = vmatprep.subr.mxu0 0.0
    %1287 = vmatpush2.msra.mxu0 0.0
    %1288 = vmatprep.subr.mxu0 0.0
    %1289 = vmatpush2.msra.mxu0 0.0
    %1290 = vmatprep.subr.mxu0 0.0
    %1291 = vmatpush2.msra.mxu0 0.0
    %1292 = vmatprep.subr.mxu0 0.0
    %1293 = vmatpush2.msra.mxu0 0.0
    %1294 = vmatprep.subr.mxu0 0.0
    %1295 = vmatpush2.msra.mxu0 0.0
    %1296 = vmatprep.subr.mxu0 0.0
    %1297 = vmatpush2.msra.mxu0 0.0
    %1298 = vmatprep.mubr.f32.mxu0 0.0
    %1299 = vmatmul.mubr.f32.gmra.mxu0 %v1232
    %v1300 = vpop.f32.mrf.mxu0
    %v1301 = vadd.f32 0.0, %v1300
    %v1302 = vpop.f32.mrf.mxu0
    %1303 = vdwg.mxu0
    %v1305 = vrot.slane %v1301, 6
    %v1307 = vadd.f32 %v138, %v1305
    %v1308 = vxor.u32 %v1307, 2147483648
    %v1309 = vmul.f32 %v1308, 1.442695
    %v1310 = vpow.pop %v1309
    %v1311 = vadd.f32 %v1310, 1.0
    %v1312 = vrcp.pop %v1311
    %v1313 = vmul.f32 1.0, %v1312
    %v1314 = vtanh.pop %v1307
    %v1316 = vrot.slane %v1115, 6
    %v1318 = vmul.f32 %v1313, %v1316
    %1320 = vrot.lane.b32.xlu0 %v1314, 64
    %v1321 = vpop.permute.xlu0 %1320
    %v1323 = vmul.f32 %v1313, %v1321
    %1325 = vrot.lane.b32.xlu0 %v1323, 32
    %v1326 = vpop.permute.xlu0 %1325
    %v1328 = vadd.f32 %v1318, %v1326
    %v1329 = vtanh.pop %v1328
    %1331 = vrot.lane.b32.xlu0 %v1329, 64
    %v1332 = vpop.permute.xlu0 %1331
    %v1334 = vmul.f32 %v1313, %v1332
    %1336 = vrot.lane.b32.xlu0 %v1334, 32
    %v1337 = vpop.permute.xlu0 %1336
    %v1339 = vrot.slane %v1226, 6
    %1340 = vrot.lane.b32.xlu0 %v1339, 64
    %v1341 = vpop.permute.xlu0 %1340
    %v1343 = vsel %vm160, %v1337, %v1341
    %v1345 = vrot.slane %v1343, 2
    %v1346 = vsel %vm264, %v1345, 0
    %1348 = vmatprep.subr.mxu0 0.0
    %1349 = vmatpush1.msra.mxu0 0.0
    %1350 = vmatprep.subr.mxu0 0.0
    %1351 = vmatpush1.msra.mxu0 0.0
    %1352 = vmatprep.subr.mxu0 0.0
    %1353 = vmatpush1.msra.mxu0 0.0
    %1354 = vmatprep.subr.mxu0 0.0
    %1355 = vmatpush1.msra.mxu0 0.0
    %1356 = vmatprep.subr.mxu0 0.0
    %1357 = vmatpush1.msra.mxu0 0.0
    %1358 = vmatprep.subr.mxu0 0.0
    %1359 = vmatpush1.msra.mxu0 0.0
    %1360 = vmatprep.subr.mxu0 0.0
    %1361 = vmatpush1.msra.mxu0 0.0
    %1362 = vmatprep.subr.mxu0 0.0
    %1363 = vmatpush1.msra.mxu0 0.0
    %1364 = vmatprep.subr.mxu0 0.0
    %1365 = vmatpush1.msra.mxu0 %v152
    %1366 = vmatprep.subr.mxu0 0.0
    %1367 = vmatpush1.msra.mxu0 %v151
    %1368 = vmatprep.subr.mxu0 0.0
    %1369 = vmatpush1.msra.mxu0 %v150
    %1370 = vmatprep.subr.mxu0 0.0
    %1371 = vmatpush1.msra.mxu0 %v149
    %1372 = vmatprep.subr.mxu0 0.0
    %1373 = vmatpush1.msra.mxu0 %v148
    %1374 = vmatprep.subr.mxu0 0.0
    %1375 = vmatpush1.msra.mxu0 %v147
    %1376 = vmatprep.subr.mxu0 0.0
    %1377 = vmatpush1.msra.mxu0 %v146
    %1378 = vmatprep.subr.mxu0 0.0
    %1379 = vmatpush1.msra.mxu0 %v145
    %1380 = vmatprep.subr.mxu0 0.0
    %1381 = vmatpush2.msra.mxu0 0.0
    %1382 = vmatprep.subr.mxu0 0.0
    %1383 = vmatpush2.msra.mxu0 0.0
    %1384 = vmatprep.subr.mxu0 0.0
    %1385 = vmatpush2.msra.mxu0 0.0
    %1386 = vmatprep.subr.mxu0 0.0
    %1387 = vmatpush2.msra.mxu0 0.0
    %1388 = vmatprep.subr.mxu0 0.0
    %1389 = vmatpush2.msra.mxu0 0.0
    %1390 = vmatprep.subr.mxu0 0.0
    %1391 = vmatpush2.msra.mxu0 0.0
    %1392 = vmatprep.subr.mxu0 0.0
    %1393 = vmatpush2.msra.mxu0 0.0
    %1394 = vmatprep.subr.mxu0 0.0
    %1395 = vmatpush2.msra.mxu0 0.0
    %1396 = vmatprep.subr.mxu0 0.0
    %1397 = vmatpush2.msra.mxu0 0.0
    %1398 = vmatprep.subr.mxu0 0.0
    %1399 = vmatpush2.msra.mxu0 0.0
    %1400 = vmatprep.subr.mxu0 0.0
    %1401 = vmatpush2.msra.mxu0 0.0
    %1402 = vmatprep.subr.mxu0 0.0
    %1403 = vmatpush2.msra.mxu0 0.0
    %1404 = vmatprep.subr.mxu0 0.0
    %1405 = vmatpush2.msra.mxu0 0.0
    %1406 = vmatprep.subr.mxu0 0.0
    %1407 = vmatpush2.msra.mxu0 0.0
    %1408 = vmatprep.subr.mxu0 0.0
    %1409 = vmatpush2.msra.mxu0 0.0
    %1410 = vmatprep.subr.mxu0 0.0
    %1411 = vmatpush2.msra.mxu0 0.0
    %1412 = vmatprep.mubr.f32.mxu0 0.0
    %1413 = vmatmul.mubr.f32.gmra.mxu0 %v1346
    %v1414 = vpop.f32.mrf.mxu0
    %v1415 = vadd.f32 %v158, %v1414
    %v1416 = vpop.f32.mrf.mxu0
    %1417 = vdwg.mxu0
    %v1418 = vxor.u32 %v1415, 2147483648
    %v1419 = vmul.f32 %v1418, 1.442695
    %v1420 = vpow.pop %v1419
    %v1421 = vadd.f32 %v1420, 1.0
    %v1422 = vrcp.pop %v1421
    %v1423 = vmul.f32 1.0, %v1422
    %v1424 = vtanh.pop %v1415
    %v1425 = vmul.f32 %v1423, %v1220
    %1427 = vrot.lane.b32.xlu0 %v1424, 64
    %v1428 = vpop.permute.xlu0 %1427
    %v1430 = vmul.f32 %v1423, %v1428
    %1432 = vrot.lane.b32.xlu0 %v1430, 32
    %v1433 = vpop.permute.xlu0 %1432
    %v1435 = vadd.f32 %v1425, %v1433
    %v1436 = vtanh.pop %v1435
    %1438 = vrot.lane.b32.xlu0 %v1436, 64
    %v1439 = vpop.permute.xlu0 %1438
    %v1441 = vmul.f32 %v1423, %v1439
    %1443 = vrot.lane.b32.xlu0 %v1441, 32
    %v1444 = vpop.permute.xlu0 %1443
    %1446 = vst.msk [vmem:[#allocation2 + $0xa] sm:$0x3] %vm366, %v1444
    %v1447 = vrot.slane %v1334, 2
    %1448 = vrot.lane.b32.xlu0 %v1447, 32
    %v1449 = vpop.permute.xlu0 %1448
    %v1450 = vsel %vm160, %v1449, 0
    %1452 = vmatprep.subr.mxu0 0.0
    %1453 = vmatpush1.msra.mxu0 0.0
    %1454 = vmatprep.subr.mxu0 0.0
    %1455 = vmatpush1.msra.mxu0 0.0
    %1456 = vmatprep.subr.mxu0 0.0
    %1457 = vmatpush1.msra.mxu0 0.0
    %1458 = vmatprep.subr.mxu0 0.0
    %1459 = vmatpush1.msra.mxu0 0.0
    %1460 = vmatprep.subr.mxu0 0.0
    %1461 = vmatpush1.msra.mxu0 0.0
    %1462 = vmatprep.subr.mxu0 0.0
    %1463 = vmatpush1.msra.mxu0 0.0
    %1464 = vmatprep.subr.mxu0 0.0
    %1465 = vmatpush1.msra.mxu0 0.0
    %1466 = vmatprep.subr.mxu0 0.0
    %1467 = vmatpush1.msra.mxu0 0.0
    %1468 = vmatprep.subr.mxu0 0.0
    %1469 = vmatpush1.msra.mxu0 0.0
    %1470 = vmatprep.subr.mxu0 0.0
    %1471 = vmatpush1.msra.mxu0 0.0
    %1472 = vmatprep.subr.mxu0 0.0
    %1473 = vmatpush1.msra.mxu0 0.0
    %1474 = vmatprep.subr.mxu0 0.0
    %1475 = vmatpush1.msra.mxu0 0.0
    %1476 = vmatprep.subr.mxu0 0.0
    %1477 = vmatpush1.msra.mxu0 %v144
    %1478 = vmatprep.subr.mxu0 0.0
    %1479 = vmatpush1.msra.mxu0 %v143
    %1480 = vmatprep.subr.mxu0 0.0
    %1481 = vmatpush1.msra.mxu0 %v142
    %1482 = vmatprep.subr.mxu0 0.0
    %1483 = vmatpush1.msra.mxu0 %v141
    %1484 = vmatprep.subr.mxu0 0.0
    %1485 = vmatpush2.msra.mxu0 0.0
    %1486 = vmatprep.subr.mxu0 0.0
    %1487 = vmatpush2.msra.mxu0 0.0
    %1488 = vmatprep.subr.mxu0 0.0
    %1489 = vmatpush2.msra.mxu0 0.0
    %1490 = vmatprep.subr.mxu0 0.0
    %1491 = vmatpush2.msra.mxu0 0.0
    %1492 = vmatprep.subr.mxu0 0.0
    %1493 = vmatpush2.msra.mxu0 0.0
    %1494 = vmatprep.subr.mxu0 0.0
    %1495 = vmatpush2.msra.mxu0 0.0
    %1496 = vmatprep.subr.mxu0 0.0
    %1497 = vmatpush2.msra.mxu0 0.0
    %1498 = vmatprep.subr.mxu0 0.0
    %1499 = vmatpush2.msra.mxu0 0.0
    %1500 = vmatprep.subr.mxu0 0.0
    %1501 = vmatpush2.msra.mxu0 0.0
    %1502 = vmatprep.subr.mxu0 0.0
    %1503 = vmatpush2.msra.mxu0 0.0
    %1504 = vmatprep.subr.mxu0 0.0
    %1505 = vmatpush2.msra.mxu0 0.0
    %1506 = vmatprep.subr.mxu0 0.0
    %1507 = vmatpush2.msra.mxu0 0.0
    %1508 = vmatprep.subr.mxu0 0.0
    %1509 = vmatpush2.msra.mxu0 0.0
    %1510 = vmatprep.subr.mxu0 0.0
    %1511 = vmatpush2.msra.mxu0 0.0
    %1512 = vmatprep.subr.mxu0 0.0
    %1513 = vmatpush2.msra.mxu0 0.0
    %1514 = vmatprep.subr.mxu0 0.0
    %1515 = vmatpush2.msra.mxu0 0.0
    %1516 = vmatprep.mubr.f32.mxu0 0.0
    %1517 = vmatmul.mubr.f32.gmra.mxu0 %v1450
    %v1518 = vpop.f32.mrf.mxu0
    %v1519 = vadd.f32 0.0, %v1518
    %v1520 = vpop.f32.mrf.mxu0
    %1521 = vdwg.mxu0
    %v1523 = vrot.slane %v1519, 4
    %v1525 = vadd.f32 %v138, %v1523
    %v1526 = vxor.u32 %v1525, 2147483648
    %v1527 = vmul.f32 %v1526, 1.442695
    %v1528 = vpow.pop %v1527
    %v1529 = vadd.f32 %v1528, 1.0
    %v1530 = vrcp.pop %v1529
    %v1531 = vmul.f32 1.0, %v1530
    %v1532 = vtanh.pop %v1525
    %v1534 = vrot.slane %v1328, 6
    %v1536 = vmul.f32 %v1531, %v1534
    %1538 = vrot.lane.b32.xlu0 %v1532, 64
    %v1539 = vpop.permute.xlu0 %1538
    %v1541 = vmul.f32 %v1531, %v1539
    %1543 = vrot.lane.b32.xlu0 %v1541, 32
    %v1544 = vpop.permute.xlu0 %1543
    %v1546 = vadd.f32 %v1536, %v1544
    %v1547 = vtanh.pop %v1546
    %1549 = vrot.lane.b32.xlu0 %v1547, 64
    %v1550 = vpop.permute.xlu0 %1549
    %v1552 = vmul.f32 %v1531, %v1550
    %1554 = vrot.lane.b32.xlu0 %v1552, 32
    %v1555 = vpop.permute.xlu0 %1554
    %v1557 = vrot.slane %v1441, 4
    %1558 = vrot.lane.b32.xlu0 %v1557, 64
    %v1559 = vpop.permute.xlu0 %1558
    %v1561 = vsel %vm160, %v1555, %v1559
    %v1563 = vrot.slane %v1561, 4
    %v1564 = vsel %vm264, %v1563, 0
    %1566 = vmatprep.subr.mxu0 0.0
    %1567 = vmatpush1.msra.mxu0 0.0
    %1568 = vmatprep.subr.mxu0 0.0
    %1569 = vmatpush1.msra.mxu0 0.0
    %1570 = vmatprep.subr.mxu0 0.0
    %1571 = vmatpush1.msra.mxu0 0.0
    %1572 = vmatprep.subr.mxu0 0.0
    %1573 = vmatpush1.msra.mxu0 0.0
    %1574 = vmatprep.subr.mxu0 0.0
    %1575 = vmatpush1.msra.mxu0 0.0
    %1576 = vmatprep.subr.mxu0 0.0
    %1577 = vmatpush1.msra.mxu0 0.0
    %1578 = vmatprep.subr.mxu0 0.0
    %1579 = vmatpush1.msra.mxu0 0.0
    %1580 = vmatprep.subr.mxu0 0.0
    %1581 = vmatpush1.msra.mxu0 0.0
    %1582 = vmatprep.subr.mxu0 0.0
    %1583 = vmatpush1.msra.mxu0 %v152
    %1584 = vmatprep.subr.mxu0 0.0
    %1585 = vmatpush1.msra.mxu0 %v151
    %1586 = vmatprep.subr.mxu0 0.0
    %1587 = vmatpush1.msra.mxu0 %v150
    %1588 = vmatprep.subr.mxu0 0.0
    %1589 = vmatpush1.msra.mxu0 %v149
    %1590 = vmatprep.subr.mxu0 0.0
    %1591 = vmatpush1.msra.mxu0 %v148
    %1592 = vmatprep.subr.mxu0 0.0
    %1593 = vmatpush1.msra.mxu0 %v147
    %1594 = vmatprep.subr.mxu0 0.0
    %1595 = vmatpush1.msra.mxu0 %v146
    %1596 = vmatprep.subr.mxu0 0.0
    %1597 = vmatpush1.msra.mxu0 %v145
    %1598 = vmatprep.subr.mxu0 0.0
    %1599 = vmatpush2.msra.mxu0 0.0
    %1600 = vmatprep.subr.mxu0 0.0
    %1601 = vmatpush2.msra.mxu0 0.0
    %1602 = vmatprep.subr.mxu0 0.0
    %1603 = vmatpush2.msra.mxu0 0.0
    %1604 = vmatprep.subr.mxu0 0.0
    %1605 = vmatpush2.msra.mxu0 0.0
    %1606 = vmatprep.subr.mxu0 0.0
    %1607 = vmatpush2.msra.mxu0 0.0
    %1608 = vmatprep.subr.mxu0 0.0
    %1609 = vmatpush2.msra.mxu0 0.0
    %1610 = vmatprep.subr.mxu0 0.0
    %1611 = vmatpush2.msra.mxu0 0.0
    %1612 = vmatprep.subr.mxu0 0.0
    %1613 = vmatpush2.msra.mxu0 0.0
    %1614 = vmatprep.subr.mxu0 0.0
    %1615 = vmatpush2.msra.mxu0 0.0
    %1616 = vmatprep.subr.mxu0 0.0
    %1617 = vmatpush2.msra.mxu0 0.0
    %1618 = vmatprep.subr.mxu0 0.0
    %1619 = vmatpush2.msra.mxu0 0.0
    %1620 = vmatprep.subr.mxu0 0.0
    %1621 = vmatpush2.msra.mxu0 0.0
    %1622 = vmatprep.subr.mxu0 0.0
    %1623 = vmatpush2.msra.mxu0 0.0
    %1624 = vmatprep.subr.mxu0 0.0
    %1625 = vmatpush2.msra.mxu0 0.0
    %1626 = vmatprep.subr.mxu0 0.0
    %1627 = vmatpush2.msra.mxu0 0.0
    %1628 = vmatprep.subr.mxu0 0.0
    %1629 = vmatpush2.msra.mxu0 0.0
    %1630 = vmatprep.mubr.f32.mxu0 0.0
    %1631 = vmatmul.mubr.f32.gmra.mxu0 %v1564
    %v1632 = vpop.f32.mrf.mxu0
    %v1633 = vadd.f32 %v158, %v1632
    %v1634 = vpop.f32.mrf.mxu0
    %1635 = vdwg.mxu0
    %v1636 = vxor.u32 %v1633, 2147483648
    %v1637 = vmul.f32 %v1636, 1.442695
    %v1638 = vpow.pop %v1637
    %v1639 = vadd.f32 %v1638, 1.0
    %v1640 = vrcp.pop %v1639
    %v1641 = vmul.f32 1.0, %v1640
    %v1642 = vtanh.pop %v1633
    %v1643 = vmul.f32 %v1641, %v1435
    %1645 = vrot.lane.b32.xlu0 %v1642, 64
    %v1646 = vpop.permute.xlu0 %1645
    %v1648 = vmul.f32 %v1641, %v1646
    %1650 = vrot.lane.b32.xlu0 %v1648, 32
    %v1651 = vpop.permute.xlu0 %1650
    %v1653 = vadd.f32 %v1643, %v1651
    %v1654 = vtanh.pop %v1653
    %1656 = vrot.lane.b32.xlu0 %v1654, 64
    %v1657 = vpop.permute.xlu0 %1656
    %v1659 = vmul.f32 %v1641, %v1657
    %1661 = vrot.lane.b32.xlu0 %v1659, 32
    %v1662 = vpop.permute.xlu0 %1661
    %1664 = vst.msk [vmem:[#allocation2 + $0xc] sm:$0x3] %vm366, %v1662
    %v1665 = vrot.slane %v1552, 4
    %1666 = vrot.lane.b32.xlu0 %v1665, 32
    %v1667 = vpop.permute.xlu0 %1666
    %v1668 = vsel %vm160, %v1667, 0
    %1670 = vmatprep.subr.mxu0 0.0
    %1671 = vmatpush1.msra.mxu0 0.0
    %1672 = vmatprep.subr.mxu0 0.0
    %1673 = vmatpush1.msra.mxu0 0.0
    %1674 = vmatprep.subr.mxu0 0.0
    %1675 = vmatpush1.msra.mxu0 0.0
    %1676 = vmatprep.subr.mxu0 0.0
    %1677 = vmatpush1.msra.mxu0 0.0
    %1678 = vmatprep.subr.mxu0 0.0
    %1679 = vmatpush1.msra.mxu0 0.0
    %1680 = vmatprep.subr.mxu0 0.0
    %1681 = vmatpush1.msra.mxu0 0.0
    %1682 = vmatprep.subr.mxu0 0.0
    %1683 = vmatpush1.msra.mxu0 0.0
    %1684 = vmatprep.subr.mxu0 0.0
    %1685 = vmatpush1.msra.mxu0 0.0
    %1686 = vmatprep.subr.mxu0 0.0
    %1687 = vmatpush1.msra.mxu0 0.0
    %1688 = vmatprep.subr.mxu0 0.0
    %1689 = vmatpush1.msra.mxu0 0.0
    %1690 = vmatprep.subr.mxu0 0.0
    %1691 = vmatpush1.msra.mxu0 0.0
    %1692 = vmatprep.subr.mxu0 0.0
    %1693 = vmatpush1.msra.mxu0 0.0
    %1694 = vmatprep.subr.mxu0 0.0
    %1695 = vmatpush1.msra.mxu0 %v144
    %1696 = vmatprep.subr.mxu0 0.0
    %1697 = vmatpush1.msra.mxu0 %v143
    %1698 = vmatprep.subr.mxu0 0.0
    %1699 = vmatpush1.msra.mxu0 %v142
    %1700 = vmatprep.subr.mxu0 0.0
    %1701 = vmatpush1.msra.mxu0 %v141
    %1702 = vmatprep.subr.mxu0 0.0
    %1703 = vmatpush2.msra.mxu0 0.0
    %1704 = vmatprep.subr.mxu0 0.0
    %1705 = vmatpush2.msra.mxu0 0.0
    %1706 = vmatprep.subr.mxu0 0.0
    %1707 = vmatpush2.msra.mxu0 0.0
    %1708 = vmatprep.subr.mxu0 0.0
    %1709 = vmatpush2.msra.mxu0 0.0
    %1710 = vmatprep.subr.mxu0 0.0
    %1711 = vmatpush2.msra.mxu0 0.0
    %1712 = vmatprep.subr.mxu0 0.0
    %1713 = vmatpush2.msra.mxu0 0.0
    %1714 = vmatprep.subr.mxu0 0.0
    %1715 = vmatpush2.msra.mxu0 0.0
    %1716 = vmatprep.subr.mxu0 0.0
    %1717 = vmatpush2.msra.mxu0 0.0
    %1718 = vmatprep.subr.mxu0 0.0
    %1719 = vmatpush2.msra.mxu0 0.0
    %1720 = vmatprep.subr.mxu0 0.0
    %1721 = vmatpush2.msra.mxu0 0.0
    %1722 = vmatprep.subr.mxu0 0.0
    %1723 = vmatpush2.msra.mxu0 0.0
    %1724 = vmatprep.subr.mxu0 0.0
    %1725 = vmatpush2.msra.mxu0 0.0
    %1726 = vmatprep.subr.mxu0 0.0
    %1727 = vmatpush2.msra.mxu0 0.0
    %1728 = vmatprep.subr.mxu0 0.0
    %1729 = vmatpush2.msra.mxu0 0.0
    %1730 = vmatprep.subr.mxu0 0.0
    %1731 = vmatpush2.msra.mxu0 0.0
    %1732 = vmatprep.subr.mxu0 0.0
    %1733 = vmatpush2.msra.mxu0 0.0
    %1734 = vmatprep.mubr.f32.mxu0 0.0
    %1735 = vmatmul.mubr.f32.gmra.mxu0 %v1668
    %v1736 = vpop.f32.mrf.mxu0
    %v1737 = vadd.f32 0.0, %v1736
    %v1738 = vpop.f32.mrf.mxu0
    %1739 = vdwg.mxu0
    %v1741 = vrot.slane %v1737, 2
    %v1743 = vadd.f32 %v138, %v1741
    %v1744 = vxor.u32 %v1743, 2147483648
    %v1745 = vmul.f32 %v1744, 1.442695
    %v1746 = vpow.pop %v1745
    %v1747 = vadd.f32 %v1746, 1.0
    %v1748 = vrcp.pop %v1747
    %v1749 = vmul.f32 1.0, %v1748
    %v1750 = vtanh.pop %v1743
    %v1752 = vrot.slane %v1546, 6
    %v1754 = vmul.f32 %v1749, %v1752
    %1756 = vrot.lane.b32.xlu0 %v1750, 64
    %v1757 = vpop.permute.xlu0 %1756
    %v1759 = vmul.f32 %v1749, %v1757
    %1761 = vrot.lane.b32.xlu0 %v1759, 32
    %v1762 = vpop.permute.xlu0 %1761
    %v1764 = vadd.f32 %v1754, %v1762
    %v1765 = vtanh.pop %v1764
    %1767 = vrot.lane.b32.xlu0 %v1765, 64
    %v1768 = vpop.permute.xlu0 %1767
    %v1770 = vmul.f32 %v1749, %v1768
    %1772 = vrot.lane.b32.xlu0 %v1770, 32
    %v1773 = vpop.permute.xlu0 %1772
    %v1775 = vrot.slane %v1659, 2
    %1776 = vrot.lane.b32.xlu0 %v1775, 64
    %v1777 = vpop.permute.xlu0 %1776
    %v1779 = vsel %vm160, %v1773, %v1777
    %v1781 = vrot.slane %v1779, 6
    %v1782 = vsel %vm264, %v1781, 0
    %1784 = vmatprep.subr.mxu0 0.0
    %1785 = vmatpush1.msra.mxu0 0.0
    %1786 = vmatprep.subr.mxu0 0.0
    %1787 = vmatpush1.msra.mxu0 0.0
    %1788 = vmatprep.subr.mxu0 0.0
    %1789 = vmatpush1.msra.mxu0 0.0
    %1790 = vmatprep.subr.mxu0 0.0
    %1791 = vmatpush1.msra.mxu0 0.0
    %1792 = vmatprep.subr.mxu0 0.0
    %1793 = vmatpush1.msra.mxu0 0.0
    %1794 = vmatprep.subr.mxu0 0.0
    %1795 = vmatpush1.msra.mxu0 0.0
    %1796 = vmatprep.subr.mxu0 0.0
    %1797 = vmatpush1.msra.mxu0 0.0
    %1798 = vmatprep.subr.mxu0 0.0
    %1799 = vmatpush1.msra.mxu0 0.0
    %1800 = vmatprep.subr.mxu0 0.0
    %1801 = vmatpush1.msra.mxu0 %v152
    %1802 = vmatprep.subr.mxu0 0.0
    %1803 = vmatpush1.msra.mxu0 %v151
    %1804 = vmatprep.subr.mxu0 0.0
    %1805 = vmatpush1.msra.mxu0 %v150
    %1806 = vmatprep.subr.mxu0 0.0
    %1807 = vmatpush1.msra.mxu0 %v149
    %1808 = vmatprep.subr.mxu0 0.0
    %1809 = vmatpush1.msra.mxu0 %v148
    %1810 = vmatprep.subr.mxu0 0.0
    %1811 = vmatpush1.msra.mxu0 %v147
    %1812 = vmatprep.subr.mxu0 0.0
    %1813 = vmatpush1.msra.mxu0 %v146
    %1814 = vmatprep.subr.mxu0 0.0
    %1815 = vmatpush1.msra.mxu0 %v145
    %1816 = vmatprep.subr.mxu0 0.0
    %1817 = vmatpush2.msra.mxu0 0.0
    %1818 = vmatprep.subr.mxu0 0.0
    %1819 = vmatpush2.msra.mxu0 0.0
    %1820 = vmatprep.subr.mxu0 0.0
    %1821 = vmatpush2.msra.mxu0 0.0
    %1822 = vmatprep.subr.mxu0 0.0
    %1823 = vmatpush2.msra.mxu0 0.0
    %1824 = vmatprep.subr.mxu0 0.0
    %1825 = vmatpush2.msra.mxu0 0.0
    %1826 = vmatprep.subr.mxu0 0.0
    %1827 = vmatpush2.msra.mxu0 0.0
    %1828 = vmatprep.subr.mxu0 0.0
    %1829 = vmatpush2.msra.mxu0 0.0
    %1830 = vmatprep.subr.mxu0 0.0
    %1831 = vmatpush2.msra.mxu0 0.0
    %1832 = vmatprep.subr.mxu0 0.0
    %1833 = vmatpush2.msra.mxu0 0.0
    %1834 = vmatprep.subr.mxu0 0.0
    %1835 = vmatpush2.msra.mxu0 0.0
    %1836 = vmatprep.subr.mxu0 0.0
    %1837 = vmatpush2.msra.mxu0 0.0
    %1838 = vmatprep.subr.mxu0 0.0
    %1839 = vmatpush2.msra.mxu0 0.0
    %1840 = vmatprep.subr.mxu0 0.0
    %1841 = vmatpush2.msra.mxu0 0.0
    %1842 = vmatprep.subr.mxu0 0.0
    %1843 = vmatpush2.msra.mxu0 0.0
    %1844 = vmatprep.subr.mxu0 0.0
    %1845 = vmatpush2.msra.mxu0 0.0
    %1846 = vmatprep.subr.mxu0 0.0
    %1847 = vmatpush2.msra.mxu0 0.0
    %1848 = vmatprep.mubr.f32.mxu0 0.0
    %1849 = vmatmul.mubr.f32.gmra.mxu0 %v1782
    %v1850 = vpop.f32.mrf.mxu0
    %v1851 = vadd.f32 %v158, %v1850
    %v1852 = vpop.f32.mrf.mxu0
    %1853 = vdwg.mxu0
    %v1854 = vxor.u32 %v1851, 2147483648
    %v1855 = vmul.f32 %v1854, 1.442695
    %v1856 = vpow.pop %v1855
    %v1857 = vadd.f32 %v1856, 1.0
    %v1858 = vrcp.pop %v1857
    %v1859 = vmul.f32 1.0, %v1858
    %v1860 = vtanh.pop %v1851
    %v1861 = vmul.f32 %v1859, %v1653
    %1863 = vrot.lane.b32.xlu0 %v1860, 64
    %v1864 = vpop.permute.xlu0 %1863
    %v1866 = vmul.f32 %v1859, %v1864
    %1868 = vrot.lane.b32.xlu0 %v1866, 32
    %v1869 = vpop.permute.xlu0 %1868
    %v1871 = vadd.f32 %v1861, %v1869
    %v1872 = vtanh.pop %v1871
    %1874 = vrot.lane.b32.xlu0 %v1872, 64
    %v1875 = vpop.permute.xlu0 %1874
    %v1877 = vmul.f32 %v1859, %v1875
    %1879 = vrot.lane.b32.xlu0 %v1877, 32
    %v1880 = vpop.permute.xlu0 %1879
    %1882 = vst.msk [vmem:[#allocation2 + $0xe] sm:$0x3] %vm366, %v1880
    %v1883 = vld [vmem:[#allocation2] sm:$0xff]
    %v1884 = vld [vmem:[#allocation2 + $0x8] sm:$0xff]
    %v1885 = vld [vmem:[%s6] sm:$0xff]
    %v1886 = vld [vmem:[%s6 + $0x8] sm:$0xff]
    %v1887 = vld [vmem:[%s6 + $0x10] sm:$0xff]
    %v1888 = vld [vmem:[%s6 + $0x18] sm:$0xff]
    %v1889 = vld [vmem:[#allocation3] sm:$0x1]
    %v1891 = vlaneseq
    %v1892 = vshrl.u32 %v1891, 7
    %v1893 = vsub.s32 0, %v1892
    %v1894 = vrot.slane %v1889, %v1893
    %v1897 = vsel %vm160, %v1883, 0
    %v1900 = vsel %vm160, %v1884, 0
    %1902 = vmatprep.subr.mxu0 0.0
    %1903 = vmatpush1.msra.mxu0 0.0
    %1904 = vmatprep.subr.mxu0 0.0
    %1905 = vmatpush1.msra.mxu0 0.0
    %1906 = vmatprep.subr.mxu0 0.0
    %1907 = vmatpush1.msra.mxu0 0.0
    %1908 = vmatprep.subr.mxu0 0.0
    %1909 = vmatpush1.msra.mxu0 0.0
    %1910 = vmatprep.subr.mxu0 0.0
    %1911 = vmatpush1.msra.mxu0 0.0
    %1912 = vmatprep.subr.mxu0 0.0
    %1913 = vmatpush1.msra.mxu0 0.0
    %1914 = vmatprep.subr.mxu0 0.0
    %1915 = vmatpush1.msra.mxu0 0.0
    %1916 = vmatprep.subr.mxu0 0.0
    %1917 = vmatpush1.msra.mxu0 0.0
    %1918 = vmatprep.subr.mxu0 0.0
    %1919 = vmatpush1.msra.mxu0 0.0
    %1920 = vmatprep.subr.mxu0 0.0
    %1921 = vmatpush1.msra.mxu0 0.0
    %1922 = vmatprep.subr.mxu0 0.0
    %1923 = vmatpush1.msra.mxu0 0.0
    %1924 = vmatprep.subr.mxu0 0.0
    %1925 = vmatpush1.msra.mxu0 0.0
    %1926 = vmatprep.subr.mxu0 0.0
    %1927 = vmatpush1.msra.mxu0 %v1888
    %1928 = vmatprep.subr.mxu0 0.0
    %1929 = vmatpush1.msra.mxu0 %v1887
    %1930 = vmatprep.subr.mxu0 0.0
    %1931 = vmatpush1.msra.mxu0 %v1886
    %1932 = vmatprep.subr.mxu0 0.0
    %1933 = vmatpush1.msra.mxu0 %v1885
    %1934 = vmatprep.subr.mxu0 0.0
    %1935 = vmatpush2.msra.mxu0 0.0
    %1936 = vmatprep.subr.mxu0 0.0
    %1937 = vmatpush2.msra.mxu0 0.0
    %1938 = vmatprep.subr.mxu0 0.0
    %1939 = vmatpush2.msra.mxu0 0.0
    %1940 = vmatprep.subr.mxu0 0.0
    %1941 = vmatpush2.msra.mxu0 0.0
    %1942 = vmatprep.subr.mxu0 0.0
    %1943 = vmatpush2.msra.mxu0 0.0
    %1944 = vmatprep.subr.mxu0 0.0
    %1945 = vmatpush2.msra.mxu0 0.0
    %1946 = vmatprep.subr.mxu0 0.0
    %1947 = vmatpush2.msra.mxu0 0.0
    %1948 = vmatprep.subr.mxu0 0.0
    %1949 = vmatpush2.msra.mxu0 0.0
    %1950 = vmatprep.subr.mxu0 0.0
    %1951 = vmatpush2.msra.mxu0 0.0
    %1952 = vmatprep.subr.mxu0 0.0
    %1953 = vmatpush2.msra.mxu0 0.0
    %1954 = vmatprep.subr.mxu0 0.0
    %1955 = vmatpush2.msra.mxu0 0.0
    %1956 = vmatprep.subr.mxu0 0.0
    %1957 = vmatpush2.msra.mxu0 0.0
    %1958 = vmatprep.subr.mxu0 0.0
    %1959 = vmatpush2.msra.mxu0 0.0
    %1960 = vmatprep.subr.mxu0 0.0
    %1961 = vmatpush2.msra.mxu0 0.0
    %1962 = vmatprep.subr.mxu0 0.0
    %1963 = vmatpush2.msra.mxu0 0.0
    %1964 = vmatprep.subr.mxu0 0.0
    %1965 = vmatpush2.msra.mxu0 0.0
    %1966 = vmatprep.mubr.f32.mxu0 0.0
    %1967 = vmatmul.mubr.f32.gmra.mxu0 %v1897
    %v1968 = vpop.f32.mrf.mxu0
    %v1969 = vadd.f32 %v1894, %v1968
    %v1970 = vpop.f32.mrf.mxu0
    %1971 = vmatprep.mubr.f32.mxu0 0.0
    %1972 = vmatmul.mubr.f32.gmra.mxu0 %v1900
    %v1973 = vpop.f32.mrf.mxu0
    %v1974 = vadd.f32 %v1894, %v1973
    %v1975 = vpop.f32.mrf.mxu0
    %1976 = vdwg.mxu0
    %1977 = vst.msk [vmem:[%s8] sm:$0xff] %vm55, %v1969
    %1978 = vst.msk [vmem:[%s8 + $0x8] sm:$0xff] %vm55, %v1974
    // Predicated region
    $region38: #{tpu_custom_call.1} parent=1 // pred_check
      _
    $region39: #{tpu_custom_call.1} parent=1 // pred_check_branch
      %1980 = sbr.rel (0) target = $region41
    $region40: #{tpu_custom_call.1} parent=1 // pred_region
      _
    $region41: #{tpu_custom_call.1} parent=1 // pred_fallthru
      _
    // Predicated region
    $region42: #{tpu_custom_call.1} parent=1 // pred_check
      _
    $region43: #{tpu_custom_call.1} parent=1 // pred_check_branch
      %1982 = sbr.rel (0) target = $region45
    $region44: #{tpu_custom_call.1} parent=1 // pred_region
      _
    $region45: #{tpu_custom_call.1} parent=1 // pred_fallthru
      _
    %1983 = vsyncpa [#allocation5], 1

</llo_original>
